<compile_context>
chip_gen: v6e
topology: v6e:2x2x1
jax: 0.10.0
libtpu: 0.0.40
codegen_flags: <defaults>
</compile_context>

<pallas_src>
import math

import numpy as np

import jax
import jax.numpy as jnp
from jax.experimental import pallas as pl
from jax.experimental.pallas import tpu as pltpu


# ---------------------------------------------------------------------------
# Conv2d -> dense operator lowering (done once at init, in numpy).
# ---------------------------------------------------------------------------
def _conv_layer_as_dense(w, b, in_chw, stride, padding):
    """Lower Conv2d(w, b, stride, padding) into a dense matrix.

    Returns (dense, bias_full, out_chw):
      dense:     (Cin*Hin*Win, Cout*Ho*Wo) f32; input/output flattened in
                 NCHW (channel-major) order; zero padding folded in.
      bias_full: (Cout*Ho*Wo,) f32 (channel-major broadcast of b).
    """
    w = np.asarray(w, np.float32)
    b = np.asarray(b, np.float32)
    Cout, Cin, k, k2 = w.shape
    assert k == k2
    Cin_in, Hin, Win = in_chw
    assert Cin_in == Cin
    Ho = (Hin + 2 * padding - k) // stride + 1
    Wo = (Win + 2 * padding - k) // stride + 1
    dense = np.zeros((Cin * Hin * Win, Cout * Ho * Wo), np.float32)

    ho = np.arange(Ho)
    wo = np.arange(Wo)
    out_hw = ho[:, None] * Wo + wo[None, :]                     # (Ho, Wo)
    for kh in range(k):
        hi = ho * stride + kh - padding                         # (Ho,)
        hvalid = (hi >= 0) & (hi < Hin)
        for kw in range(k):
            wi = wo * stride + kw - padding                     # (Wo,)
            wvalid = (wi >= 0) & (wi < Win)
            valid = hvalid[:, None] & wvalid[None, :]           # (Ho, Wo)
            if not np.any(valid):
                continue
            in_hw = hi[:, None] * Win + wi[None, :]
            o_idx = out_hw[valid]
            i_idx = in_hw[valid]
            for ci in range(Cin):
                rows = ci * Hin * Win + i_idx
                for co in range(Cout):
                    dense[rows, co * Ho * Wo + o_idx] = w[co, ci, kh, kw]
    bias_full = np.repeat(b, Ho * Wo)                            # channel-major
    return dense, bias_full, (Cout, Ho, Wo)


# ---------------------------------------------------------------------------
# Fused Pallas kernel: x -> (matmul + bias + ReLU) per layer -> flat output.
# ---------------------------------------------------------------------------
def _make_fused_kernel(n_layers, compute_dtype):
    """kernel(x_ref, w0, b0, w1, b1, ..., o_ref): chained matmul+bias+ReLU."""

    def kernel(*refs):
        x_ref, o_ref = refs[0], refs[-1]
        h = x_ref[...]
        for li in range(n_layers):
            w_ref = refs[1 + 2 * li]
            b_ref = refs[2 + 2 * li]
            acc = jnp.dot(h.astype(compute_dtype), w_ref[...],
                          preferred_element_type=jnp.float32)   # MXU, f32 acc
            h = jnp.maximum(acc + b_ref[...], 0.0)               # f32 bias+ReLU
        o_ref[...] = h.astype(o_ref.dtype)

    return kernel


def _round_up(x, m):
    return ((x + m - 1) // m) * m


def _pick_tile_m(m, d_in, d_out, d_max, in_itemsize):
    """Batch-row tile: multiple of 8 sublanes, <=512, ~6 MiB streaming budget."""
    m8 = _round_up(max(m, 1), 8)
    per_row = 2 * d_in * in_itemsize + 2 * d_out * 4 + 2 * d_max * 4
    tm = (6 << 20) // max(per_row, 1)
    tm = max(8, min(512, (tm // 8) * 8))
    return min(tm, m8)


def fused_cnn_forward(x2d, layers, out_dtype=jnp.float32):
    """x2d: (M, D0) flattened NCHW activations (compute dtype).
    layers: list of (W (Din, Dout) compute-dtype, b (1, Dout) f32)."""
    m, d0 = x2d.shape
    dims = [d0] + [w.shape[1] for w, _ in layers]
    d_out = dims[-1]
    d_max = max(dims)
    in_itemsize = x2d.dtype.itemsize

    tm = _pick_tile_m(m, d0, d_out, d_max, in_itemsize)
    m_pad = _round_up(m, tm)
    if m_pad != m:
        x2d = jnp.pad(x2d, ((0, m_pad - m), (0, 0)))

    in_specs = [pl.BlockSpec((tm, d0), lambda i: (i, 0))]
    args = [x2d]
    for w, b in layers:
        din, dout = w.shape
        in_specs.append(pl.BlockSpec((din, dout), lambda i: (0, 0)))   # resident
        in_specs.append(pl.BlockSpec((1, dout), lambda i: (0, 0)))
        args += [w, b]
    out_spec = pl.BlockSpec((tm, d_out), lambda i: (i, 0))

    weight_bytes = sum(w.size * w.dtype.itemsize + b.size * b.dtype.itemsize
                       for w, b in layers)
    flops = 2 * m_pad * sum(a * b for a, b in zip(dims[:-1], dims[1:]))
    bytes_accessed = (m_pad * d0 * in_itemsize
                      + m_pad * d_out * jnp.dtype(out_dtype).itemsize
                      + weight_bytes)
    vmem_needed = (2 * tm * d0 * in_itemsize        # x tiles (double-buffered)
                   + 2 * tm * d_out * 4             # out tiles
                   + 2 * weight_bytes               # resident weights/biases
                   + 2 * tm * d_max * 4)            # in-kernel f32 intermediates
    vmem_limit = int(min(48 << 20, max(32 << 20, 2 * vmem_needed)))

    out = pl.pallas_call(
        _make_fused_kernel(len(layers), x2d.dtype),
        out_shape=jax.ShapeDtypeStruct((m_pad, d_out), out_dtype),
        grid=(m_pad // tm,),
        in_specs=in_specs,
        out_specs=out_spec,
        compiler_params=pltpu.CompilerParams(
            dimension_semantics=("parallel",),
            vmem_limit_bytes=vmem_limit),
        cost_estimate=pl.CostEstimate(
            flops=int(flops), transcendentals=0,
            bytes_accessed=int(bytes_accessed)),
    )(*args)
    return out[:m]


# ---------------------------------------------------------------------------
# Module wrapper (mirrors the PyTorch CNN forward semantics).
# ---------------------------------------------------------------------------
class CNNPallas:
    """JAX/Pallas equivalent of the PyTorch CNN module's forward pass."""

    def __init__(self, obs_shape, hidden_channels, kernel_sizes, strides,
                 paddings, key, compute_dtype=jnp.bfloat16):
        assert len(obs_shape) == 3
        self.compute_dtype = compute_dtype
        chans = [obs_shape[0]] + list(hidden_channels)
        self.cfg = list(zip(chans[:-1], chans[1:], kernel_sizes, strides, paddings))

        # Deterministic init mirroring init(m, orthogonal_, constant_(0),
        # calculate_gain('relu')): orthogonal weights (relu gain), zero bias.
        gain = math.sqrt(2.0)
        ortho = jax.nn.initializers.orthogonal(scale=gain)
        self.conv_params = []     # torch-layout (Cout, Cin, k, k) f32 params
        for in_ch, out_ch, k, _s, _p in self.cfg:
            key, wk = jax.random.split(key)
            w = ortho(wk, (out_ch, in_ch * k * k), jnp.float32)
            w = w.reshape(out_ch, in_ch, k, k)
            b = jnp.zeros((out_ch,), jnp.float32)
            self.conv_params.append((w, b))

        # Precompute the fused-kernel operand layout ONCE (perf feedback: no
        # per-call weight transposes; operators stored MXU-ready in bf16).
        self.dense_layers = []
        cur = tuple(obs_shape)
        for (w, b), (_in_ch, _out_ch, _k, s, p) in zip(self.conv_params, self.cfg):
            dense, bias_full, cur = _conv_layer_as_dense(
                np.asarray(w), np.asarray(b), cur, s, p)
            self.dense_layers.append(
                (jnp.asarray(dense, compute_dtype),
                 jnp.asarray(bias_full, jnp.float32).reshape(1, -1)))

        self.in_dim = int(np.prod(obs_shape))
        self.out_dim = int(np.prod(cur))     # same as torch's zero-forward probe
        self._final_chw = cur

    def __call__(self, x_nchw):
        # x: (..., C, H, W) just like the torch module (leading dims preserved).
        lead = x_nchw.shape[:-3]
        x2d = x_nchw.reshape((-1, self.in_dim)).astype(self.compute_dtype)
        out2d = fused_cnn_forward(x2d, self.dense_layers, out_dtype=jnp.float32)
        # Column ordering of the last operator is already the NCHW flatten,
        # so this matches torch's x.view(x.shape[:-3] + (out_dim,)).
        return out2d.reshape(lead + (self.out_dim,))


def _reference_forward(x_nchw, conv_params, cfg):
    """Pure-JAX f32 conv+ReLU reference (for correctness cross-check only)."""
    x = x_nchw
    for (w, b), (_in_ch, _out_ch, _k, s, p) in zip(conv_params, cfg):
        x = jax.lax.conv_general_dilated(
            x, w, window_strides=(s, s), padding=[(p, p), (p, p)],
            dimension_numbers=("NCHW", "OIHW", "NCHW"))
        x = jnp.maximum(x + b.reshape(1, -1, 1, 1), 0.0)
    return x.reshape(x.shape[0], -1)


if __name__ == "__main__":
    key = jax.random.PRNGKey(0)
    key, xkey, pkey = jax.random.split(key, 3)

    obs_shape = (4, 16, 16)                       # (C, H, W)
    model = CNNPallas(
        obs_shape,
        hidden_channels=[8, 16],
        kernel_sizes=[3, 3],
        strides=[2, 2],
        paddings=[1, 1],
        key=pkey,
    )

    x = jax.random.normal(xkey, (2,) + obs_shape, dtype=jnp.float32)   # (N,C,H,W)
    out = jax.block_until_ready(model(x))

    expected = (2, model.out_dim)                 # (2, 16*4*4) = (2, 256)
    assert out.shape == expected, (out.shape, expected)
    assert bool(jnp.all(out >= 0.0)), "stack ends in ReLU; outputs must be >= 0"

    # Cross-check the fused Pallas path against a pure-JAX f32 conv reference
    # (bf16 MXU inputs + f32 accumulation -> small relative error).
    ref = jax.block_until_ready(_reference_forward(x, model.conv_params, model.cfg))
    err = float(jnp.max(jnp.abs(out - ref)) / (jnp.max(jnp.abs(ref)) + 1e-6))
    assert err < 1e-1, f"fused kernel mismatch vs reference: rel err {err}"

    print("KERNEL_OK")
</pallas_src>

<mosaic_0001>
module attributes {stable_mosaic.version = 11 : i64} {
  func.func @kernel(%arg0: i32, %arg1: memref<8x1024xbf16, #tpu.memory_space<vmem>>, %arg2: memref<1024x512xbf16, #tpu.memory_space<vmem>>, %arg3: memref<1x512xf32, #tpu.memory_space<vmem>>, %arg4: memref<512x256xbf16, #tpu.memory_space<vmem>>, %arg5: memref<1x256xf32, #tpu.memory_space<vmem>>, %arg6: memref<8x256xf32, #tpu.memory_space<vmem>>) attributes {dimension_semantics = [#tpu.dimension_semantics<parallel>], iteration_bounds = array<i64: 1>, scalar_prefetch = 0 : i64, scratch_operands = 0 : i64, tpu.core_type = #tpu.core_type<tc>, window_params = [{transform_indices = @transform_0, window_bounds = array<i64: 8, 1024>}, {pipeline_mode = #tpu.pipeline_mode<synchronous>, transform_indices = @transform_1, window_bounds = array<i64: 1024, 512>}, {pipeline_mode = #tpu.pipeline_mode<synchronous>, transform_indices = @transform_2, window_bounds = array<i64: 1, 512>}, {pipeline_mode = #tpu.pipeline_mode<synchronous>, transform_indices = @transform_3, window_bounds = array<i64: 512, 256>}, {pipeline_mode = #tpu.pipeline_mode<synchronous>, transform_indices = @transform_4, window_bounds = array<i64: 1, 256>}, {transform_indices = @transform_5, window_bounds = array<i64: 8, 256>}]} {
    %c0 = arith.constant 0 : index
    %c0_0 = arith.constant 0 : index
    %0 = vector.load %arg1[%c0, %c0_0] : memref<8x1024xbf16, #tpu.memory_space<vmem>>, vector<8x1024xbf16>
    %c0_1 = arith.constant 0 : index
    %c0_2 = arith.constant 0 : index
    %1 = vector.load %arg2[%c0_1, %c0_2] : memref<1024x512xbf16, #tpu.memory_space<vmem>>, vector<1024x512xbf16>
    %cst = arith.constant dense<0.000000e+00> : vector<8x512xf32>
    %2 = tpu.matmul %0, %1, %cst {dimension_numbers = #tpu.dot_dimension_numbers<[1], [0], [0], [1], [0, 0, 1, 1], [], []>} : vector<8x1024xbf16>, vector<1024x512xbf16>, vector<8x512xf32> -> vector<8x512xf32>
    %c0_3 = arith.constant 0 : index
    %c0_4 = arith.constant 0 : index
    %3 = vector.load %arg3[%c0_3, %c0_4] : memref<1x512xf32, #tpu.memory_space<vmem>>, vector<1x512xf32>
    %4 = vector.broadcast %3 : vector<1x512xf32> to vector<8x512xf32>
    %5 = arith.addf %2, %4 : vector<8x512xf32>
    %cst_5 = arith.constant 0.000000e+00 : f32
    %6 = vector.broadcast %cst_5 : f32 to vector<8x512xf32>
    %7 = arith.maximumf %5, %6 : vector<8x512xf32>
    %8 = arith.truncf %7 : vector<8x512xf32> to vector<8x512xbf16>
    %c0_6 = arith.constant 0 : index
    %c0_7 = arith.constant 0 : index
    %9 = vector.load %arg4[%c0_6, %c0_7] : memref<512x256xbf16, #tpu.memory_space<vmem>>, vector<512x256xbf16>
    %cst_8 = arith.constant dense<0.000000e+00> : vector<8x256xf32>
    %10 = tpu.matmul %8, %9, %cst_8 {dimension_numbers = #tpu.dot_dimension_numbers<[1], [0], [0], [1], [0, 0, 1, 1], [], []>} : vector<8x512xbf16>, vector<512x256xbf16>, vector<8x256xf32> -> vector<8x256xf32>
    %c0_9 = arith.constant 0 : index
    %c0_10 = arith.constant 0 : index
    %11 = vector.load %arg5[%c0_9, %c0_10] : memref<1x256xf32, #tpu.memory_space<vmem>>, vector<1x256xf32>
    %12 = vector.broadcast %11 : vector<1x256xf32> to vector<8x256xf32>
    %13 = arith.addf %10, %12 : vector<8x256xf32>
    %cst_11 = arith.constant 0.000000e+00 : f32
    %14 = vector.broadcast %cst_11 : f32 to vector<8x256xf32>
    %15 = arith.maximumf %13, %14 : vector<8x256xf32>
    %c0_12 = arith.constant 0 : index
    %c0_13 = arith.constant 0 : index
    %16 = vector.load %arg6[%c0_12, %c0_13] : memref<8x256xf32, #tpu.memory_space<vmem>>, vector<8x256xf32>
    tpu.vector_store %arg6[%c0_12, %c0_13], %15 {strides = array<i32>} : memref<8x256xf32, #tpu.memory_space<vmem>>, vector<8x256xf32>,
    return
  }
  func.func @transform_0(%arg0: i32) -> (i32, i32) {
    %c0_i32 = arith.constant 0 : i32
    %c0_i32_0 = arith.constant 0 : i32
    return %arg0, %c0_i32 : i32, i32
  }
  func.func @transform_1(%arg0: i32) -> (i32, i32) {
    %c0_i32 = arith.constant 0 : i32
    %c0_i32_0 = arith.constant 0 : i32
    %c0_i32_1 = arith.constant 0 : i32
    return %c0_i32, %c0_i32_0 : i32, i32
  }
  func.func @transform_2(%arg0: i32) -> (i32, i32) {
    %c0_i32 = arith.constant 0 : i32
    %c0_i32_0 = arith.constant 0 : i32
    %c0_i32_1 = arith.constant 0 : i32
    return %c0_i32, %c0_i32_0 : i32, i32
  }
  func.func @transform_3(%arg0: i32) -> (i32, i32) {
    %c0_i32 = arith.constant 0 : i32
    %c0_i32_0 = arith.constant 0 : i32
    %c0_i32_1 = arith.constant 0 : i32
    return %c0_i32, %c0_i32_0 : i32, i32
  }
  func.func @transform_4(%arg0: i32) -> (i32, i32) {
    %c0_i32 = arith.constant 0 : i32
    %c0_i32_0 = arith.constant 0 : i32
    %c0_i32_1 = arith.constant 0 : i32
    return %c0_i32, %c0_i32_0 : i32, i32
  }
  func.func @transform_5(%arg0: i32) -> (i32, i32) {
    %c0_i32 = arith.constant 0 : i32
    %c0_i32_0 = arith.constant 0 : i32
    return %arg0, %c0_i32 : i32, i32
  }
}

</mosaic_0001>

<llo_original>
// kernel: tpu_custom_call.1
$region0: #{tpu_custom_call.1}
  #allocation0 [shape = 'u32[]', space=smem, size = 0x4, offset = 0x4, fixed_abs, tag = 'smem constant byte address 0x4 - core index']
  #allocation1 [shape = 'u32[144,128]{1,0:T(1,128)}', space=vmem, size = 0x12000, scoped, tag = 'internal scratch']
  %s0 = inlined_call_operand.hbm [shape: bf16[8,1024], index: 0, kind: input, shape index: {}]
  %s1 = inlined_call_operand.hbm [shape: bf16[1024,512], index: 1, kind: input, shape index: {}]
  %s2 = inlined_call_operand.hbm [shape: f32[1,512], index: 2, kind: input, shape index: {}]
  %s3 = inlined_call_operand.hbm [shape: bf16[512,256], index: 3, kind: input, shape index: {}]
  %s4 = inlined_call_operand.vmem [shape: f32[1,256], index: 4, kind: input, shape index: {}]
  %s5 = inlined_call_operand.hbm [shape: f32[8,256], index: 5, kind: output, shape index: {}]
  %s6 = sld [smem:[#allocation0]]
  $region46: #{tpu_custom_call.1} parent=0
    _
  %s8 = ssub.s32 1, %s6
  %s9 = scalar_select 0, %s8, %s6
  $region1: #{tpu_custom_call.1} parent=0
    #allocation2 [shape = 'u8[16384]{0}', space=vmem, size = 0x4000, scoped, tag = 'input window, operand 0, single buffered']
    #allocation3 [shape = 's32[1]{0}', space=sflag, size = 0x4, scoped, tag = 'scoped memory for tpu_custom_call.1']
    #allocation4 [shape = 's32[1]{0}', space=sflag, size = 0x4, scoped, tag = 'scoped memory for tpu_custom_call.1']
    #allocation5 [shape = 'u8[1048576]{0}', space=vmem, size = 0x100000, scoped, tag = 'input window, operand 1, single buffered']
    #allocation6 [shape = 's32[1]{0}', space=sflag, size = 0x4, scoped, tag = 'scoped memory for tpu_custom_call.1']
    #allocation7 [shape = 'u8[2048]{0}', space=vmem, size = 0x800, scoped, tag = 'input window, operand 2, single buffered']
    #allocation8 [shape = 'u8[262144]{0}', space=vmem, size = 0x40000, scoped, tag = 'input window, operand 3, single buffered']
    #allocation9 [shape = 's32[1]{0}', space=sflag, size = 0x4, scoped, tag = 'scoped memory for tpu_custom_call.1']
    #allocation10 [shape = 'u8[8192]{0}', space=vmem, size = 0x2000, scoped, tag = 'output window, operand 0, single buffered']
    %10 = vsyncpa [#allocation3], 0
    %11 = vsyncpa [#allocation6], 0
    %12 = vsyncpa [#allocation9], 0
    %13 = vsyncpa [#allocation4], 0
    // Predicated region
    $region2: #{tpu_custom_call.1} parent=1 // pred_check
      _
    $region3: #{tpu_custom_call.1} parent=1 // pred_check_branch
      %15 = sbr.rel (0) target = $region5
    $region4: #{tpu_custom_call.1} parent=1 // pred_region
      %s17 = ssub.s32 512, 512
      %18 = vsyncadd [#allocation3], %s17
      %s20 = sshll.u32 [#allocation2], 4
      %s21 = int_to_ptr.vmem [resolvable:$true] %s20
      %23 = dma.hbm_to_vmem [thread:$0]  %s0, 512, %s21, [#allocation3]
    $region5: #{tpu_custom_call.1} parent=1 // pred_fallthru
      _
    // Predicated region
    $region6: #{tpu_custom_call.1} parent=1 // pred_check
      _
    $region7: #{tpu_custom_call.1} parent=1 // pred_check_branch
      %25 = sbr.rel (0) target = $region9
    $region8: #{tpu_custom_call.1} parent=1 // pred_region
      %s27 = ssub.s32 32768, 32768
      %28 = vsyncadd [#allocation6], %s27
      %s29 = sshll.u32 [#allocation5], 4
      %s30 = int_to_ptr.vmem [resolvable:$true] %s29
      %35 = dma.hbm_to_vmem [thread:$0]  %s1, 32768, %s30, [#allocation6], 256, 256, 16
    $region9: #{tpu_custom_call.1} parent=1 // pred_fallthru
      _
    // Predicated region
    $region10: #{tpu_custom_call.1} parent=1 // pred_check
      _
    $region11: #{tpu_custom_call.1} parent=1 // pred_check_branch
      %37 = sbr.rel (0) target = $region13
    $region12: #{tpu_custom_call.1} parent=1 // pred_region
      %s39 = ssub.s32 64, 64
      %40 = vsyncadd [#allocation6], %s39
      %s42 = sshll.u32 [#allocation7], 4
      %s43 = int_to_ptr.vmem [resolvable:$true] %s42
      %45 = dma.hbm_to_vmem [thread:$0]  %s2, 64, %s43, [#allocation6]
    $region13: #{tpu_custom_call.1} parent=1 // pred_fallthru
      _
    // Predicated region
    $region14: #{tpu_custom_call.1} parent=1 // pred_check
      _
    $region15: #{tpu_custom_call.1} parent=1 // pred_check_branch
      %47 = sbr.rel (0) target = $region17
    $region16: #{tpu_custom_call.1} parent=1 // pred_region
      %s49 = ssub.s32 8192, 8192
      %50 = vsyncadd [#allocation9], %s49
      %s51 = sshll.u32 [#allocation8], 4
      %s52 = int_to_ptr.vmem [resolvable:$true] %s51
      %57 = dma.hbm_to_vmem [thread:$0]  %s3, 8192, %s52, [#allocation9], 128, 128, 8
    $region17: #{tpu_custom_call.1} parent=1 // pred_fallthru
      _
    // Predicated region
    $region18: #{tpu_custom_call.1} parent=1 // pred_check
      _
    $region19: #{tpu_custom_call.1} parent=1 // pred_check_branch
      %59 = sbr.rel (0) target = $region21
    $region20: #{tpu_custom_call.1} parent=1 // pred_region
      _
    $region21: #{tpu_custom_call.1} parent=1 // pred_fallthru
      _
    // Predicated region
    $region22: #{tpu_custom_call.1} parent=1 // pred_check
      _
    $region23: #{tpu_custom_call.1} parent=1 // pred_check_branch
      %61 = sbr.rel (0) target = $region25
    $region24: #{tpu_custom_call.1} parent=1 // pred_region
      %62 = dma.done [#allocation3], 512
    $region25: #{tpu_custom_call.1} parent=1 // pred_fallthru
      _
    // Predicated region
    $region26: #{tpu_custom_call.1} parent=1 // pred_check
      _
    $region27: #{tpu_custom_call.1} parent=1 // pred_check_branch
      %64 = sbr.rel (0) target = $region29
    $region28: #{tpu_custom_call.1} parent=1 // pred_region
      %65 = dma.done [#allocation6], 32768
    $region29: #{tpu_custom_call.1} parent=1 // pred_fallthru
      _
    // Predicated region
    $region30: #{tpu_custom_call.1} parent=1 // pred_check
      _
    $region31: #{tpu_custom_call.1} parent=1 // pred_check_branch
      %67 = sbr.rel (0) target = $region33
    $region32: #{tpu_custom_call.1} parent=1 // pred_region
      %68 = dma.done [#allocation6], 64
    $region33: #{tpu_custom_call.1} parent=1 // pred_fallthru
      _
    // Predicated region
    $region34: #{tpu_custom_call.1} parent=1 // pred_check
      _
    $region35: #{tpu_custom_call.1} parent=1 // pred_check_branch
      %70 = sbr.rel (0) target = $region37
    $region36: #{tpu_custom_call.1} parent=1 // pred_region
      %71 = dma.done [#allocation9], 8192
    $region37: #{tpu_custom_call.1} parent=1 // pred_fallthru
      _
    %v72 = vld [vmem:[#allocation2] sm:$0xff]
    %v73 = vld [vmem:[#allocation2 + $0x8] sm:$0xff]
    %v74 = vld [vmem:[#allocation2 + $0x10] sm:$0xff]
    %v75 = vld [vmem:[#allocation2 + $0x18] sm:$0xff]
    %v76 = vld [vmem:[#allocation5] sm:$0xff]
    %v77 = vld [vmem:[#allocation5 + $0x8] sm:$0xff]
    %v78 = vld [vmem:[#allocation5 + $0x10] sm:$0xff]
    %v79 = vld [vmem:[#allocation5 + $0x18] sm:$0xff]
    %v80 = vld [vmem:[#allocation5 + $0x20] sm:$0xff]
    %v81 = vld [vmem:[#allocation5 + $0x28] sm:$0xff]
    %v82 = vld [vmem:[#allocation5 + $0x30] sm:$0xff]
    %v83 = vld [vmem:[#allocation5 + $0x38] sm:$0xff]
    %v84 = vld [vmem:[#allocation5 + $0x40] sm:$0xff]
    %v85 = vld [vmem:[#allocation5 + $0x48] sm:$0xff]
    %v86 = vld [vmem:[#allocation5 + $0x50] sm:$0xff]
    %v87 = vld [vmem:[#allocation5 + $0x58] sm:$0xff]
    %v88 = vld [vmem:[#allocation5 + $0x60] sm:$0xff]
    %v89 = vld [vmem:[#allocation5 + $0x68] sm:$0xff]
    %v90 = vld [vmem:[#allocation5 + $0x70] sm:$0xff]
    %v91 = vld [vmem:[#allocation5 + $0x78] sm:$0xff]
    %v92 = vld [vmem:[#allocation5 + $0x80] sm:$0xff]
    %v93 = vld [vmem:[#allocation5 + $0x88] sm:$0xff]
    %v94 = vld [vmem:[#allocation5 + $0x90] sm:$0xff]
    %v95 = vld [vmem:[#allocation5 + $0x98] sm:$0xff]
    %v96 = vld [vmem:[#allocation5 + $0xa0] sm:$0xff]
    %v97 = vld [vmem:[#allocation5 + $0xa8] sm:$0xff]
    %v98 = vld [vmem:[#allocation5 + $0xb0] sm:$0xff]
    %v99 = vld [vmem:[#allocation5 + $0xb8] sm:$0xff]
    %v100 = vld [vmem:[#allocation5 + $0xc0] sm:$0xff]
    %v101 = vld [vmem:[#allocation5 + $0xc8] sm:$0xff]
    %v102 = vld [vmem:[#allocation5 + $0xd0] sm:$0xff]
    %v103 = vld [vmem:[#allocation5 + $0xd8] sm:$0xff]
    %v104 = vld [vmem:[#allocation5 + $0xe0] sm:$0xff]
    %v105 = vld [vmem:[#allocation5 + $0xe8] sm:$0xff]
    %v106 = vld [vmem:[#allocation5 + $0xf0] sm:$0xff]
    %v107 = vld [vmem:[#allocation5 + $0xf8] sm:$0xff]
    %v108 = vld [vmem:[#allocation5 + $0x100] sm:$0xff]
    %v109 = vld [vmem:[#allocation5 + $0x108] sm:$0xff]
    %v110 = vld [vmem:[#allocation5 + $0x110] sm:$0xff]
    %v111 = vld [vmem:[#allocation5 + $0x118] sm:$0xff]
    %v112 = vld [vmem:[#allocation5 + $0x120] sm:$0xff]
    %v113 = vld [vmem:[#allocation5 + $0x128] sm:$0xff]
    %v114 = vld [vmem:[#allocation5 + $0x130] sm:$0xff]
    %v115 = vld [vmem:[#allocation5 + $0x138] sm:$0xff]
    %v116 = vld [vmem:[#allocation5 + $0x140] sm:$0xff]
    %v117 = vld [vmem:[#allocation5 + $0x148] sm:$0xff]
    %v118 = vld [vmem:[#allocation5 + $0x150] sm:$0xff]
    %v119 = vld [vmem:[#allocation5 + $0x158] sm:$0xff]
    %v120 = vld [vmem:[#allocation5 + $0x160] sm:$0xff]
    %v121 = vld [vmem:[#allocation5 + $0x168] sm:$0xff]
    %v122 = vld [vmem:[#allocation5 + $0x170] sm:$0xff]
    %v123 = vld [vmem:[#allocation5 + $0x178] sm:$0xff]
    %v124 = vld [vmem:[#allocation5 + $0x180] sm:$0xff]
    %v125 = vld [vmem:[#allocation5 + $0x188] sm:$0xff]
    %v126 = vld [vmem:[#allocation5 + $0x190] sm:$0xff]
    %v127 = vld [vmem:[#allocation5 + $0x198] sm:$0xff]
    %v128 = vld [vmem:[#allocation5 + $0x1a0] sm:$0xff]
    %v129 = vld [vmem:[#allocation5 + $0x1a8] sm:$0xff]
    %v130 = vld [vmem:[#allocation5 + $0x1b0] sm:$0xff]
    %v131 = vld [vmem:[#allocation5 + $0x1b8] sm:$0xff]
    %v132 = vld [vmem:[#allocation5 + $0x1c0] sm:$0xff]
    %v133 = vld [vmem:[#allocation5 + $0x1c8] sm:$0xff]
    %v134 = vld [vmem:[#allocation5 + $0x1d0] sm:$0xff]
    %v135 = vld [vmem:[#allocation5 + $0x1d8] sm:$0xff]
    %v136 = vld [vmem:[#allocation5 + $0x1e0] sm:$0xff]
    %v137 = vld [vmem:[#allocation5 + $0x1e8] sm:$0xff]
    %v138 = vld [vmem:[#allocation5 + $0x1f0] sm:$0xff]
    %v139 = vld [vmem:[#allocation5 + $0x1f8] sm:$0xff]
    %v140 = vld [vmem:[#allocation5 + $0x200] sm:$0xff]
    %v141 = vld [vmem:[#allocation5 + $0x208] sm:$0xff]
    %v142 = vld [vmem:[#allocation5 + $0x210] sm:$0xff]
    %v143 = vld [vmem:[#allocation5 + $0x218] sm:$0xff]
    %v144 = vld [vmem:[#allocation5 + $0x220] sm:$0xff]
    %v145 = vld [vmem:[#allocation5 + $0x228] sm:$0xff]
    %v146 = vld [vmem:[#allocation5 + $0x230] sm:$0xff]
    %v147 = vld [vmem:[#allocation5 + $0x238] sm:$0xff]
    %v148 = vld [vmem:[#allocation5 + $0x240] sm:$0xff]
    %v149 = vld [vmem:[#allocation5 + $0x248] sm:$0xff]
    %v150 = vld [vmem:[#allocation5 + $0x250] sm:$0xff]
    %v151 = vld [vmem:[#allocation5 + $0x258] sm:$0xff]
    %v152 = vld [vmem:[#allocation5 + $0x260] sm:$0xff]
    %v153 = vld [vmem:[#allocation5 + $0x268] sm:$0xff]
    %v154 = vld [vmem:[#allocation5 + $0x270] sm:$0xff]
    %v155 = vld [vmem:[#allocation5 + $0x278] sm:$0xff]
    %v156 = vld [vmem:[#allocation5 + $0x280] sm:$0xff]
    %v157 = vld [vmem:[#allocation5 + $0x288] sm:$0xff]
    %v158 = vld [vmem:[#allocation5 + $0x290] sm:$0xff]
    %v159 = vld [vmem:[#allocation5 + $0x298] sm:$0xff]
    %v160 = vld [vmem:[#allocation5 + $0x2a0] sm:$0xff]
    %v161 = vld [vmem:[#allocation5 + $0x2a8] sm:$0xff]
    %v162 = vld [vmem:[#allocation5 + $0x2b0] sm:$0xff]
    %v163 = vld [vmem:[#allocation5 + $0x2b8] sm:$0xff]
    %v164 = vld [vmem:[#allocation5 + $0x2c0] sm:$0xff]
    %v165 = vld [vmem:[#allocation5 + $0x2c8] sm:$0xff]
    %v166 = vld [vmem:[#allocation5 + $0x2d0] sm:$0xff]
    %v167 = vld [vmem:[#allocation5 + $0x2d8] sm:$0xff]
    %v168 = vld [vmem:[#allocation5 + $0x2e0] sm:$0xff]
    %v169 = vld [vmem:[#allocation5 + $0x2e8] sm:$0xff]
    %v170 = vld [vmem:[#allocation5 + $0x2f0] sm:$0xff]
    %v171 = vld [vmem:[#allocation5 + $0x2f8] sm:$0xff]
    %v172 = vld [vmem:[#allocation5 + $0x300] sm:$0xff]
    %v173 = vld [vmem:[#allocation5 + $0x308] sm:$0xff]
    %v174 = vld [vmem:[#allocation5 + $0x310] sm:$0xff]
    %v175 = vld [vmem:[#allocation5 + $0x318] sm:$0xff]
    %v176 = vld [vmem:[#allocation5 + $0x320] sm:$0xff]
    %v177 = vld [vmem:[#allocation5 + $0x328] sm:$0xff]
    %v178 = vld [vmem:[#allocation5 + $0x330] sm:$0xff]
    %v179 = vld [vmem:[#allocation5 + $0x338] sm:$0xff]
    %v180 = vld [vmem:[#allocation5 + $0x340] sm:$0xff]
    %v181 = vld [vmem:[#allocation5 + $0x348] sm:$0xff]
    %v182 = vld [vmem:[#allocation5 + $0x350] sm:$0xff]
    %v183 = vld [vmem:[#allocation5 + $0x358] sm:$0xff]
    %v184 = vld [vmem:[#allocation5 + $0x360] sm:$0xff]
    %v185 = vld [vmem:[#allocation5 + $0x368] sm:$0xff]
    %v186 = vld [vmem:[#allocation5 + $0x370] sm:$0xff]
    %v187 = vld [vmem:[#allocation5 + $0x378] sm:$0xff]
    %v188 = vld [vmem:[#allocation5 + $0x380] sm:$0xff]
    %v189 = vld [vmem:[#allocation5 + $0x388] sm:$0xff]
    %v190 = vld [vmem:[#allocation5 + $0x390] sm:$0xff]
    %v191 = vld [vmem:[#allocation5 + $0x398] sm:$0xff]
    %v192 = vld [vmem:[#allocation5 + $0x3a0] sm:$0xff]
    %v193 = vld [vmem:[#allocation5 + $0x3a8] sm:$0xff]
    %v194 = vld [vmem:[#allocation5 + $0x3b0] sm:$0xff]
    %v195 = vld [vmem:[#allocation5 + $0x3b8] sm:$0xff]
    %v196 = vld [vmem:[#allocation5 + $0x3c0] sm:$0xff]
    %v197 = vld [vmem:[#allocation5 + $0x3c8] sm:$0xff]
    %v198 = vld [vmem:[#allocation5 + $0x3d0] sm:$0xff]
    %v199 = vld [vmem:[#allocation5 + $0x3d8] sm:$0xff]
    %v200 = vld [vmem:[#allocation5 + $0x3e0] sm:$0xff]
    %v201 = vld [vmem:[#allocation5 + $0x3e8] sm:$0xff]
    %v202 = vld [vmem:[#allocation5 + $0x3f0] sm:$0xff]
    %v203 = vld [vmem:[#allocation5 + $0x3f8] sm:$0xff]
    %v204 = vld [vmem:[#allocation5 + $0x400] sm:$0xff]
    %v205 = vld [vmem:[#allocation5 + $0x408] sm:$0xff]
    %v206 = vld [vmem:[#allocation5 + $0x410] sm:$0xff]
    %v207 = vld [vmem:[#allocation5 + $0x418] sm:$0xff]
    %v208 = vld [vmem:[#allocation5 + $0x420] sm:$0xff]
    %v209 = vld [vmem:[#allocation5 + $0x428] sm:$0xff]
    %v210 = vld [vmem:[#allocation5 + $0x430] sm:$0xff]
    %v211 = vld [vmem:[#allocation5 + $0x438] sm:$0xff]
    %v212 = vld [vmem:[#allocation5 + $0x440] sm:$0xff]
    %v213 = vld [vmem:[#allocation5 + $0x448] sm:$0xff]
    %v214 = vld [vmem:[#allocation5 + $0x450] sm:$0xff]
    %v215 = vld [vmem:[#allocation5 + $0x458] sm:$0xff]
    %v216 = vld [vmem:[#allocation5 + $0x460] sm:$0xff]
    %v217 = vld [vmem:[#allocation5 + $0x468] sm:$0xff]
    %v218 = vld [vmem:[#allocation5 + $0x470] sm:$0xff]
    %v219 = vld [vmem:[#allocation5 + $0x478] sm:$0xff]
    %v220 = vld [vmem:[#allocation5 + $0x480] sm:$0xff]
    %v221 = vld [vmem:[#allocation5 + $0x488] sm:$0xff]
    %v222 = vld [vmem:[#allocation5 + $0x490] sm:$0xff]
    %v223 = vld [vmem:[#allocation5 + $0x498] sm:$0xff]
    %v224 = vld [vmem:[#allocation5 + $0x4a0] sm:$0xff]
    %v225 = vld [vmem:[#allocation5 + $0x4a8] sm:$0xff]
    %v226 = vld [vmem:[#allocation5 + $0x4b0] sm:$0xff]
    %v227 = vld [vmem:[#allocation5 + $0x4b8] sm:$0xff]
    %v228 = vld [vmem:[#allocation5 + $0x4c0] sm:$0xff]
    %v229 = vld [vmem:[#allocation5 + $0x4c8] sm:$0xff]
    %v230 = vld [vmem:[#allocation5 + $0x4d0] sm:$0xff]
    %v231 = vld [vmem:[#allocation5 + $0x4d8] sm:$0xff]
    %v232 = vld [vmem:[#allocation5 + $0x4e0] sm:$0xff]
    %v233 = vld [vmem:[#allocation5 + $0x4e8] sm:$0xff]
    %v234 = vld [vmem:[#allocation5 + $0x4f0] sm:$0xff]
    %v235 = vld [vmem:[#allocation5 + $0x4f8] sm:$0xff]
    %v236 = vld [vmem:[#allocation5 + $0x500] sm:$0xff]
    %v237 = vld [vmem:[#allocation5 + $0x508] sm:$0xff]
    %v238 = vld [vmem:[#allocation5 + $0x510] sm:$0xff]
    %v239 = vld [vmem:[#allocation5 + $0x518] sm:$0xff]
    %v240 = vld [vmem:[#allocation5 + $0x520] sm:$0xff]
    %v241 = vld [vmem:[#allocation5 + $0x528] sm:$0xff]
    %v242 = vld [vmem:[#allocation5 + $0x530] sm:$0xff]
    %v243 = vld [vmem:[#allocation5 + $0x538] sm:$0xff]
    %v244 = vld [vmem:[#allocation5 + $0x540] sm:$0xff]
    %v245 = vld [vmem:[#allocation5 + $0x548] sm:$0xff]
    %v246 = vld [vmem:[#allocation5 + $0x550] sm:$0xff]
    %v247 = vld [vmem:[#allocation5 + $0x558] sm:$0xff]
    %v248 = vld [vmem:[#allocation5 + $0x560] sm:$0xff]
    %v249 = vld [vmem:[#allocation5 + $0x568] sm:$0xff]
    %v250 = vld [vmem:[#allocation5 + $0x570] sm:$0xff]
    %v251 = vld [vmem:[#allocation5 + $0x578] sm:$0xff]
    %v252 = vld [vmem:[#allocation5 + $0x580] sm:$0xff]
    %v253 = vld [vmem:[#allocation5 + $0x588] sm:$0xff]
    %v254 = vld [vmem:[#allocation5 + $0x590] sm:$0xff]
    %v255 = vld [vmem:[#allocation5 + $0x598] sm:$0xff]
    %v256 = vld [vmem:[#allocation5 + $0x5a0] sm:$0xff]
    %v257 = vld [vmem:[#allocation5 + $0x5a8] sm:$0xff]
    %v258 = vld [vmem:[#allocation5 + $0x5b0] sm:$0xff]
    %v259 = vld [vmem:[#allocation5 + $0x5b8] sm:$0xff]
    %v260 = vld [vmem:[#allocation5 + $0x5c0] sm:$0xff]
    %v261 = vld [vmem:[#allocation5 + $0x5c8] sm:$0xff]
    %v262 = vld [vmem:[#allocation5 + $0x5d0] sm:$0xff]
    %v263 = vld [vmem:[#allocation5 + $0x5d8] sm:$0xff]
    %v264 = vld [vmem:[#allocation5 + $0x5e0] sm:$0xff]
    %v265 = vld [vmem:[#allocation5 + $0x5e8] sm:$0xff]
    %v266 = vld [vmem:[#allocation5 + $0x5f0] sm:$0xff]
    %v267 = vld [vmem:[#allocation5 + $0x5f8] sm:$0xff]
    %v268 = vld [vmem:[#allocation5 + $0x600] sm:$0xff]
    %v269 = vld [vmem:[#allocation5 + $0x608] sm:$0xff]
    %v270 = vld [vmem:[#allocation5 + $0x610] sm:$0xff]
    %v271 = vld [vmem:[#allocation5 + $0x618] sm:$0xff]
    %v272 = vld [vmem:[#allocation5 + $0x620] sm:$0xff]
    %v273 = vld [vmem:[#allocation5 + $0x628] sm:$0xff]
    %v274 = vld [vmem:[#allocation5 + $0x630] sm:$0xff]
    %v275 = vld [vmem:[#allocation5 + $0x638] sm:$0xff]
    %v276 = vld [vmem:[#allocation5 + $0x640] sm:$0xff]
    %v277 = vld [vmem:[#allocation5 + $0x648] sm:$0xff]
    %v278 = vld [vmem:[#allocation5 + $0x650] sm:$0xff]
    %v279 = vld [vmem:[#allocation5 + $0x658] sm:$0xff]
    %v280 = vld [vmem:[#allocation5 + $0x660] sm:$0xff]
    %v281 = vld [vmem:[#allocation5 + $0x668] sm:$0xff]
    %v282 = vld [vmem:[#allocation5 + $0x670] sm:$0xff]
    %v283 = vld [vmem:[#allocation5 + $0x678] sm:$0xff]
    %v284 = vld [vmem:[#allocation5 + $0x680] sm:$0xff]
    %v285 = vld [vmem:[#allocation5 + $0x688] sm:$0xff]
    %v286 = vld [vmem:[#allocation5 + $0x690] sm:$0xff]
    %v287 = vld [vmem:[#allocation5 + $0x698] sm:$0xff]
    %v288 = vld [vmem:[#allocation5 + $0x6a0] sm:$0xff]
    %v289 = vld [vmem:[#allocation5 + $0x6a8] sm:$0xff]
    %v290 = vld [vmem:[#allocation5 + $0x6b0] sm:$0xff]
    %v291 = vld [vmem:[#allocation5 + $0x6b8] sm:$0xff]
    %v292 = vld [vmem:[#allocation5 + $0x6c0] sm:$0xff]
    %v293 = vld [vmem:[#allocation5 + $0x6c8] sm:$0xff]
    %v294 = vld [vmem:[#allocation5 + $0x6d0] sm:$0xff]
    %v295 = vld [vmem:[#allocation5 + $0x6d8] sm:$0xff]
    %v296 = vld [vmem:[#allocation5 + $0x6e0] sm:$0xff]
    %v297 = vld [vmem:[#allocation5 + $0x6e8] sm:$0xff]
    %v298 = vld [vmem:[#allocation5 + $0x6f0] sm:$0xff]
    %v299 = vld [vmem:[#allocation5 + $0x6f8] sm:$0xff]
    %v300 = vld [vmem:[#allocation5 + $0x700] sm:$0xff]
    %v301 = vld [vmem:[#allocation5 + $0x708] sm:$0xff]
    %v302 = vld [vmem:[#allocation5 + $0x710] sm:$0xff]
    %v303 = vld [vmem:[#allocation5 + $0x718] sm:$0xff]
    %v304 = vld [vmem:[#allocation5 + $0x720] sm:$0xff]
    %v305 = vld [vmem:[#allocation5 + $0x728] sm:$0xff]
    %v306 = vld [vmem:[#allocation5 + $0x730] sm:$0xff]
    %v307 = vld [vmem:[#allocation5 + $0x738] sm:$0xff]
    %v308 = vld [vmem:[#allocation5 + $0x740] sm:$0xff]
    %v309 = vld [vmem:[#allocation5 + $0x748] sm:$0xff]
    %v310 = vld [vmem:[#allocation5 + $0x750] sm:$0xff]
    %v311 = vld [vmem:[#allocation5 + $0x758] sm:$0xff]
    %v312 = vld [vmem:[#allocation5 + $0x760] sm:$0xff]
    %v313 = vld [vmem:[#allocation5 + $0x768] sm:$0xff]
    %v314 = vld [vmem:[#allocation5 + $0x770] sm:$0xff]
    %v315 = vld [vmem:[#allocation5 + $0x778] sm:$0xff]
    %v316 = vld [vmem:[#allocation5 + $0x780] sm:$0xff]
    %v317 = vld [vmem:[#allocation5 + $0x788] sm:$0xff]
    %v318 = vld [vmem:[#allocation5 + $0x790] sm:$0xff]
    %v319 = vld [vmem:[#allocation5 + $0x798] sm:$0xff]
    %v320 = vld [vmem:[#allocation5 + $0x7a0] sm:$0xff]
    %v321 = vld [vmem:[#allocation5 + $0x7a8] sm:$0xff]
    %v322 = vld [vmem:[#allocation5 + $0x7b0] sm:$0xff]
    %v323 = vld [vmem:[#allocation5 + $0x7b8] sm:$0xff]
    %v324 = vld [vmem:[#allocation5 + $0x7c0] sm:$0xff]
    %v325 = vld [vmem:[#allocation5 + $0x7c8] sm:$0xff]
    %v326 = vld [vmem:[#allocation5 + $0x7d0] sm:$0xff]
    %v327 = vld [vmem:[#allocation5 + $0x7d8] sm:$0xff]
    %v328 = vld [vmem:[#allocation5 + $0x7e0] sm:$0xff]
    %v329 = vld [vmem:[#allocation5 + $0x7e8] sm:$0xff]
    %v330 = vld [vmem:[#allocation5 + $0x7f0] sm:$0xff]
    %v331 = vld [vmem:[#allocation5 + $0x7f8] sm:$0xff]
    %v332 = vld [vmem:[#allocation7] sm:$0xf]
    %v334 = vlaneseq
    %v335 = vshrl.u32 %v334, 7
    %v336 = vsub.s32 0, %v335
    %v337 = vrot.slane %v332, %v336
    %v338 = vlaneseq
    %v339 = vshrl.u32 %v338, 7
    %v340 = vsub.s32 1, %v339
    %v341 = vrot.slane %v332, %v340
    %v342 = vlaneseq
    %v343 = vshrl.u32 %v342, 7
    %v344 = vsub.s32 2, %v343
    %v345 = vrot.slane %v332, %v344
    %v346 = vlaneseq
    %v347 = vshrl.u32 %v346, 7
    %v348 = vsub.s32 3, %v347
    %v349 = vrot.slane %v332, %v348
    %v358 = vunpack.c.l.b16 %v72
    %v359 = vunpack.c.h.b16 %v72
    %v360 = vunpack.c.l.b16 %v73
    %v361 = vunpack.c.h.b16 %v73
    %v362 = vunpack.c.l.b16 %v74
    %v363 = vunpack.c.h.b16 %v74
    %v364 = vunpack.c.l.b16 %v75
    %v365 = vunpack.c.h.b16 %v75
    %v366 = vpack.c.b16 %v358, %v358
    %v367 = vpack.c.b16 %v359, %v359
    %v368 = vpack.c.b16 %v360, %v360
    %v369 = vpack.c.b16 %v361, %v361
    %v370 = vpack.c.b16 %v362, %v362
    %v371 = vpack.c.b16 %v363, %v363
    %v372 = vpack.c.b16 %v364, %v364
    %v373 = vpack.c.b16 %v365, %v365
    %v638 = vunpack.c.l.b16 %v76
    %v639 = vunpack.c.h.b16 %v76
    %v640 = vunpack.c.l.b16 %v77
    %v641 = vunpack.c.h.b16 %v77
    %v642 = vunpack.c.l.b16 %v78
    %v643 = vunpack.c.h.b16 %v78
    %v644 = vunpack.c.l.b16 %v79
    %v645 = vunpack.c.h.b16 %v79
    %v646 = vunpack.c.l.b16 %v80
    %v647 = vunpack.c.h.b16 %v80
    %v648 = vunpack.c.l.b16 %v81
    %v649 = vunpack.c.h.b16 %v81
    %v650 = vunpack.c.l.b16 %v82
    %v651 = vunpack.c.h.b16 %v82
    %v652 = vunpack.c.l.b16 %v83
    %v653 = vunpack.c.h.b16 %v83
    %v654 = vunpack.c.l.b16 %v84
    %v655 = vunpack.c.h.b16 %v84
    %v656 = vunpack.c.l.b16 %v85
    %v657 = vunpack.c.h.b16 %v85
    %v658 = vunpack.c.l.b16 %v86
    %v659 = vunpack.c.h.b16 %v86
    %v660 = vunpack.c.l.b16 %v87
    %v661 = vunpack.c.h.b16 %v87
    %v662 = vunpack.c.l.b16 %v88
    %v663 = vunpack.c.h.b16 %v88
    %v664 = vunpack.c.l.b16 %v89
    %v665 = vunpack.c.h.b16 %v89
    %v666 = vunpack.c.l.b16 %v90
    %v667 = vunpack.c.h.b16 %v90
    %v668 = vunpack.c.l.b16 %v91
    %v669 = vunpack.c.h.b16 %v91
    %v670 = vunpack.c.l.b16 %v92
    %v671 = vunpack.c.h.b16 %v92
    %v672 = vunpack.c.l.b16 %v93
    %v673 = vunpack.c.h.b16 %v93
    %v674 = vunpack.c.l.b16 %v94
    %v675 = vunpack.c.h.b16 %v94
    %v676 = vunpack.c.l.b16 %v95
    %v677 = vunpack.c.h.b16 %v95
    %v678 = vunpack.c.l.b16 %v96
    %v679 = vunpack.c.h.b16 %v96
    %v680 = vunpack.c.l.b16 %v97
    %v681 = vunpack.c.h.b16 %v97
    %v682 = vunpack.c.l.b16 %v98
    %v683 = vunpack.c.h.b16 %v98
    %v684 = vunpack.c.l.b16 %v99
    %v685 = vunpack.c.h.b16 %v99
    %v686 = vunpack.c.l.b16 %v100
    %v687 = vunpack.c.h.b16 %v100
    %v688 = vunpack.c.l.b16 %v101
    %v689 = vunpack.c.h.b16 %v101
    %v690 = vunpack.c.l.b16 %v102
    %v691 = vunpack.c.h.b16 %v102
    %v692 = vunpack.c.l.b16 %v103
    %v693 = vunpack.c.h.b16 %v103
    %v694 = vunpack.c.l.b16 %v104
    %v695 = vunpack.c.h.b16 %v104
    %v696 = vunpack.c.l.b16 %v105
    %v697 = vunpack.c.h.b16 %v105
    %v698 = vunpack.c.l.b16 %v106
    %v699 = vunpack.c.h.b16 %v106
    %v700 = vunpack.c.l.b16 %v107
    %v701 = vunpack.c.h.b16 %v107
    %v702 = vunpack.c.l.b16 %v108
    %v703 = vunpack.c.h.b16 %v108
    %v704 = vunpack.c.l.b16 %v109
    %v705 = vunpack.c.h.b16 %v109
    %v706 = vunpack.c.l.b16 %v110
    %v707 = vunpack.c.h.b16 %v110
    %v708 = vunpack.c.l.b16 %v111
    %v709 = vunpack.c.h.b16 %v111
    %v710 = vunpack.c.l.b16 %v112
    %v711 = vunpack.c.h.b16 %v112
    %v712 = vunpack.c.l.b16 %v113
    %v713 = vunpack.c.h.b16 %v113
    %v714 = vunpack.c.l.b16 %v114
    %v715 = vunpack.c.h.b16 %v114
    %v716 = vunpack.c.l.b16 %v115
    %v717 = vunpack.c.h.b16 %v115
    %v718 = vunpack.c.l.b16 %v116
    %v719 = vunpack.c.h.b16 %v116
    %v720 = vunpack.c.l.b16 %v117
    %v721 = vunpack.c.h.b16 %v117
    %v722 = vunpack.c.l.b16 %v118
    %v723 = vunpack.c.h.b16 %v118
    %v724 = vunpack.c.l.b16 %v119
    %v725 = vunpack.c.h.b16 %v119
    %v726 = vunpack.c.l.b16 %v120
    %v727 = vunpack.c.h.b16 %v120
    %v728 = vunpack.c.l.b16 %v121
    %v729 = vunpack.c.h.b16 %v121
    %v730 = vunpack.c.l.b16 %v122
    %v731 = vunpack.c.h.b16 %v122
    %v732 = vunpack.c.l.b16 %v123
    %v733 = vunpack.c.h.b16 %v123
    %v734 = vunpack.c.l.b16 %v124
    %v735 = vunpack.c.h.b16 %v124
    %v736 = vunpack.c.l.b16 %v125
    %v737 = vunpack.c.h.b16 %v125
    %v738 = vunpack.c.l.b16 %v126
    %v739 = vunpack.c.h.b16 %v126
    %v740 = vunpack.c.l.b16 %v127
    %v741 = vunpack.c.h.b16 %v127
    %v742 = vunpack.c.l.b16 %v128
    %v743 = vunpack.c.h.b16 %v128
    %v744 = vunpack.c.l.b16 %v129
    %v745 = vunpack.c.h.b16 %v129
    %v746 = vunpack.c.l.b16 %v130
    %v747 = vunpack.c.h.b16 %v130
    %v748 = vunpack.c.l.b16 %v131
    %v749 = vunpack.c.h.b16 %v131
    %v750 = vunpack.c.l.b16 %v132
    %v751 = vunpack.c.h.b16 %v132
    %v752 = vunpack.c.l.b16 %v133
    %v753 = vunpack.c.h.b16 %v133
    %v754 = vunpack.c.l.b16 %v134
    %v755 = vunpack.c.h.b16 %v134
    %v756 = vunpack.c.l.b16 %v135
    %v757 = vunpack.c.h.b16 %v135
    %v758 = vunpack.c.l.b16 %v136
    %v759 = vunpack.c.h.b16 %v136
    %v760 = vunpack.c.l.b16 %v137
    %v761 = vunpack.c.h.b16 %v137
    %v762 = vunpack.c.l.b16 %v138
    %v763 = vunpack.c.h.b16 %v138
    %v764 = vunpack.c.l.b16 %v139
    %v765 = vunpack.c.h.b16 %v139
    %v766 = vunpack.c.l.b16 %v140
    %v767 = vunpack.c.h.b16 %v140
    %v768 = vunpack.c.l.b16 %v141
    %v769 = vunpack.c.h.b16 %v141
    %v770 = vunpack.c.l.b16 %v142
    %v771 = vunpack.c.h.b16 %v142
    %v772 = vunpack.c.l.b16 %v143
    %v773 = vunpack.c.h.b16 %v143
    %v774 = vunpack.c.l.b16 %v144
    %v775 = vunpack.c.h.b16 %v144
    %v776 = vunpack.c.l.b16 %v145
    %v777 = vunpack.c.h.b16 %v145
    %v778 = vunpack.c.l.b16 %v146
    %v779 = vunpack.c.h.b16 %v146
    %v780 = vunpack.c.l.b16 %v147
    %v781 = vunpack.c.h.b16 %v147
    %v782 = vunpack.c.l.b16 %v148
    %v783 = vunpack.c.h.b16 %v148
    %v784 = vunpack.c.l.b16 %v149
    %v785 = vunpack.c.h.b16 %v149
    %v786 = vunpack.c.l.b16 %v150
    %v787 = vunpack.c.h.b16 %v150
    %v788 = vunpack.c.l.b16 %v151
    %v789 = vunpack.c.h.b16 %v151
    %v790 = vunpack.c.l.b16 %v152
    %v791 = vunpack.c.h.b16 %v152
    %v792 = vunpack.c.l.b16 %v153
    %v793 = vunpack.c.h.b16 %v153
    %v794 = vunpack.c.l.b16 %v154
    %v795 = vunpack.c.h.b16 %v154
    %v796 = vunpack.c.l.b16 %v155
    %v797 = vunpack.c.h.b16 %v155
    %v798 = vunpack.c.l.b16 %v156
    %v799 = vunpack.c.h.b16 %v156
    %v800 = vunpack.c.l.b16 %v157
    %v801 = vunpack.c.h.b16 %v157
    %v802 = vunpack.c.l.b16 %v158
    %v803 = vunpack.c.h.b16 %v158
    %v804 = vunpack.c.l.b16 %v159
    %v805 = vunpack.c.h.b16 %v159
    %v806 = vunpack.c.l.b16 %v160
    %v807 = vunpack.c.h.b16 %v160
    %v808 = vunpack.c.l.b16 %v161
    %v809 = vunpack.c.h.b16 %v161
    %v810 = vunpack.c.l.b16 %v162
    %v811 = vunpack.c.h.b16 %v162
    %v812 = vunpack.c.l.b16 %v163
    %v813 = vunpack.c.h.b16 %v163
    %v814 = vunpack.c.l.b16 %v164
    %v815 = vunpack.c.h.b16 %v164
    %v816 = vunpack.c.l.b16 %v165
    %v817 = vunpack.c.h.b16 %v165
    %v818 = vunpack.c.l.b16 %v166
    %v819 = vunpack.c.h.b16 %v166
    %v820 = vunpack.c.l.b16 %v167
    %v821 = vunpack.c.h.b16 %v167
    %v822 = vunpack.c.l.b16 %v168
    %v823 = vunpack.c.h.b16 %v168
    %v824 = vunpack.c.l.b16 %v169
    %v825 = vunpack.c.h.b16 %v169
    %v826 = vunpack.c.l.b16 %v170
    %v827 = vunpack.c.h.b16 %v170
    %v828 = vunpack.c.l.b16 %v171
    %v829 = vunpack.c.h.b16 %v171
    %v830 = vunpack.c.l.b16 %v172
    %v831 = vunpack.c.h.b16 %v172
    %v832 = vunpack.c.l.b16 %v173
    %v833 = vunpack.c.h.b16 %v173
    %v834 = vunpack.c.l.b16 %v174
    %v835 = vunpack.c.h.b16 %v174
    %v836 = vunpack.c.l.b16 %v175
    %v837 = vunpack.c.h.b16 %v175
    %v838 = vunpack.c.l.b16 %v176
    %v839 = vunpack.c.h.b16 %v176
    %v840 = vunpack.c.l.b16 %v177
    %v841 = vunpack.c.h.b16 %v177
    %v842 = vunpack.c.l.b16 %v178
    %v843 = vunpack.c.h.b16 %v178
    %v844 = vunpack.c.l.b16 %v179
    %v845 = vunpack.c.h.b16 %v179
    %v846 = vunpack.c.l.b16 %v180
    %v847 = vunpack.c.h.b16 %v180
    %v848 = vunpack.c.l.b16 %v181
    %v849 = vunpack.c.h.b16 %v181
    %v850 = vunpack.c.l.b16 %v182
    %v851 = vunpack.c.h.b16 %v182
    %v852 = vunpack.c.l.b16 %v183
    %v853 = vunpack.c.h.b16 %v183
    %v854 = vunpack.c.l.b16 %v184
    %v855 = vunpack.c.h.b16 %v184
    %v856 = vunpack.c.l.b16 %v185
    %v857 = vunpack.c.h.b16 %v185
    %v858 = vunpack.c.l.b16 %v186
    %v859 = vunpack.c.h.b16 %v186
    %v860 = vunpack.c.l.b16 %v187
    %v861 = vunpack.c.h.b16 %v187
    %v862 = vunpack.c.l.b16 %v188
    %v863 = vunpack.c.h.b16 %v188
    %v864 = vunpack.c.l.b16 %v189
    %v865 = vunpack.c.h.b16 %v189
    %v866 = vunpack.c.l.b16 %v190
    %v867 = vunpack.c.h.b16 %v190
    %v868 = vunpack.c.l.b16 %v191
    %v869 = vunpack.c.h.b16 %v191
    %v870 = vunpack.c.l.b16 %v192
    %v871 = vunpack.c.h.b16 %v192
    %v872 = vunpack.c.l.b16 %v193
    %v873 = vunpack.c.h.b16 %v193
    %v874 = vunpack.c.l.b16 %v194
    %v875 = vunpack.c.h.b16 %v194
    %v876 = vunpack.c.l.b16 %v195
    %v877 = vunpack.c.h.b16 %v195
    %v878 = vunpack.c.l.b16 %v196
    %v879 = vunpack.c.h.b16 %v196
    %v880 = vunpack.c.l.b16 %v197
    %v881 = vunpack.c.h.b16 %v197
    %v882 = vunpack.c.l.b16 %v198
    %v883 = vunpack.c.h.b16 %v198
    %v884 = vunpack.c.l.b16 %v199
    %v885 = vunpack.c.h.b16 %v199
    %v886 = vunpack.c.l.b16 %v200
    %v887 = vunpack.c.h.b16 %v200
    %v888 = vunpack.c.l.b16 %v201
    %v889 = vunpack.c.h.b16 %v201
    %v890 = vunpack.c.l.b16 %v202
    %v891 = vunpack.c.h.b16 %v202
    %v892 = vunpack.c.l.b16 %v203
    %v893 = vunpack.c.h.b16 %v203
    %v894 = vunpack.c.l.b16 %v204
    %v895 = vunpack.c.h.b16 %v204
    %v896 = vunpack.c.l.b16 %v205
    %v897 = vunpack.c.h.b16 %v205
    %v898 = vunpack.c.l.b16 %v206
    %v899 = vunpack.c.h.b16 %v206
    %v900 = vunpack.c.l.b16 %v207
    %v901 = vunpack.c.h.b16 %v207
    %v902 = vunpack.c.l.b16 %v208
    %v903 = vunpack.c.h.b16 %v208
    %v904 = vunpack.c.l.b16 %v209
    %v905 = vunpack.c.h.b16 %v209
    %v906 = vunpack.c.l.b16 %v210
    %v907 = vunpack.c.h.b16 %v210
    %v908 = vunpack.c.l.b16 %v211
    %v909 = vunpack.c.h.b16 %v211
    %v910 = vunpack.c.l.b16 %v212
    %v911 = vunpack.c.h.b16 %v212
    %v912 = vunpack.c.l.b16 %v213
    %v913 = vunpack.c.h.b16 %v213
    %v914 = vunpack.c.l.b16 %v214
    %v915 = vunpack.c.h.b16 %v214
    %v916 = vunpack.c.l.b16 %v215
    %v917 = vunpack.c.h.b16 %v215
    %v918 = vunpack.c.l.b16 %v216
    %v919 = vunpack.c.h.b16 %v216
    %v920 = vunpack.c.l.b16 %v217
    %v921 = vunpack.c.h.b16 %v217
    %v922 = vunpack.c.l.b16 %v218
    %v923 = vunpack.c.h.b16 %v218
    %v924 = vunpack.c.l.b16 %v219
    %v925 = vunpack.c.h.b16 %v219
    %v926 = vunpack.c.l.b16 %v220
    %v927 = vunpack.c.h.b16 %v220
    %v928 = vunpack.c.l.b16 %v221
    %v929 = vunpack.c.h.b16 %v221
    %v930 = vunpack.c.l.b16 %v222
    %v931 = vunpack.c.h.b16 %v222
    %v932 = vunpack.c.l.b16 %v223
    %v933 = vunpack.c.h.b16 %v223
    %v934 = vunpack.c.l.b16 %v224
    %v935 = vunpack.c.h.b16 %v224
    %v936 = vunpack.c.l.b16 %v225
    %v937 = vunpack.c.h.b16 %v225
    %v938 = vunpack.c.l.b16 %v226
    %v939 = vunpack.c.h.b16 %v226
    %v940 = vunpack.c.l.b16 %v227
    %v941 = vunpack.c.h.b16 %v227
    %v942 = vunpack.c.l.b16 %v228
    %v943 = vunpack.c.h.b16 %v228
    %v944 = vunpack.c.l.b16 %v229
    %v945 = vunpack.c.h.b16 %v229
    %v946 = vunpack.c.l.b16 %v230
    %v947 = vunpack.c.h.b16 %v230
    %v948 = vunpack.c.l.b16 %v231
    %v949 = vunpack.c.h.b16 %v231
    %v950 = vunpack.c.l.b16 %v232
    %v951 = vunpack.c.h.b16 %v232
    %v952 = vunpack.c.l.b16 %v233
    %v953 = vunpack.c.h.b16 %v233
    %v954 = vunpack.c.l.b16 %v234
    %v955 = vunpack.c.h.b16 %v234
    %v956 = vunpack.c.l.b16 %v235
    %v957 = vunpack.c.h.b16 %v235
    %v958 = vunpack.c.l.b16 %v236
    %v959 = vunpack.c.h.b16 %v236
    %v960 = vunpack.c.l.b16 %v237
    %v961 = vunpack.c.h.b16 %v237
    %v962 = vunpack.c.l.b16 %v238
    %v963 = vunpack.c.h.b16 %v238
    %v964 = vunpack.c.l.b16 %v239
    %v965 = vunpack.c.h.b16 %v239
    %v966 = vunpack.c.l.b16 %v240
    %v967 = vunpack.c.h.b16 %v240
    %v968 = vunpack.c.l.b16 %v241
    %v969 = vunpack.c.h.b16 %v241
    %v970 = vunpack.c.l.b16 %v242
    %v971 = vunpack.c.h.b16 %v242
    %v972 = vunpack.c.l.b16 %v243
    %v973 = vunpack.c.h.b16 %v243
    %v974 = vunpack.c.l.b16 %v244
    %v975 = vunpack.c.h.b16 %v244
    %v976 = vunpack.c.l.b16 %v245
    %v977 = vunpack.c.h.b16 %v245
    %v978 = vunpack.c.l.b16 %v246
    %v979 = vunpack.c.h.b16 %v246
    %v980 = vunpack.c.l.b16 %v247
    %v981 = vunpack.c.h.b16 %v247
    %v982 = vunpack.c.l.b16 %v248
    %v983 = vunpack.c.h.b16 %v248
    %v984 = vunpack.c.l.b16 %v249
    %v985 = vunpack.c.h.b16 %v249
    %v986 = vunpack.c.l.b16 %v250
    %v987 = vunpack.c.h.b16 %v250
    %v988 = vunpack.c.l.b16 %v251
    %v989 = vunpack.c.h.b16 %v251
    %v990 = vunpack.c.l.b16 %v252
    %v991 = vunpack.c.h.b16 %v252
    %v992 = vunpack.c.l.b16 %v253
    %v993 = vunpack.c.h.b16 %v253
    %v994 = vunpack.c.l.b16 %v254
    %v995 = vunpack.c.h.b16 %v254
    %v996 = vunpack.c.l.b16 %v255
    %v997 = vunpack.c.h.b16 %v255
    %v998 = vunpack.c.l.b16 %v256
    %v999 = vunpack.c.h.b16 %v256
    %v1000 = vunpack.c.l.b16 %v257
    %v1001 = vunpack.c.h.b16 %v257
    %v1002 = vunpack.c.l.b16 %v258
    %v1003 = vunpack.c.h.b16 %v258
    %v1004 = vunpack.c.l.b16 %v259
    %v1005 = vunpack.c.h.b16 %v259
    %v1006 = vunpack.c.l.b16 %v260
    %v1007 = vunpack.c.h.b16 %v260
    %v1008 = vunpack.c.l.b16 %v261
    %v1009 = vunpack.c.h.b16 %v261
    %v1010 = vunpack.c.l.b16 %v262
    %v1011 = vunpack.c.h.b16 %v262
    %v1012 = vunpack.c.l.b16 %v263
    %v1013 = vunpack.c.h.b16 %v263
    %v1014 = vunpack.c.l.b16 %v264
    %v1015 = vunpack.c.h.b16 %v264
    %v1016 = vunpack.c.l.b16 %v265
    %v1017 = vunpack.c.h.b16 %v265
    %v1018 = vunpack.c.l.b16 %v266
    %v1019 = vunpack.c.h.b16 %v266
    %v1020 = vunpack.c.l.b16 %v267
    %v1021 = vunpack.c.h.b16 %v267
    %v1022 = vunpack.c.l.b16 %v268
    %v1023 = vunpack.c.h.b16 %v268
    %v1024 = vunpack.c.l.b16 %v269
    %v1025 = vunpack.c.h.b16 %v269
    %v1026 = vunpack.c.l.b16 %v270
    %v1027 = vunpack.c.h.b16 %v270
    %v1028 = vunpack.c.l.b16 %v271
    %v1029 = vunpack.c.h.b16 %v271
    %v1030 = vunpack.c.l.b16 %v272
    %v1031 = vunpack.c.h.b16 %v272
    %v1032 = vunpack.c.l.b16 %v273
    %v1033 = vunpack.c.h.b16 %v273
    %v1034 = vunpack.c.l.b16 %v274
    %v1035 = vunpack.c.h.b16 %v274
    %v1036 = vunpack.c.l.b16 %v275
    %v1037 = vunpack.c.h.b16 %v275
    %v1038 = vunpack.c.l.b16 %v276
    %v1039 = vunpack.c.h.b16 %v276
    %v1040 = vunpack.c.l.b16 %v277
    %v1041 = vunpack.c.h.b16 %v277
    %v1042 = vunpack.c.l.b16 %v278
    %v1043 = vunpack.c.h.b16 %v278
    %v1044 = vunpack.c.l.b16 %v279
    %v1045 = vunpack.c.h.b16 %v279
    %v1046 = vunpack.c.l.b16 %v280
    %v1047 = vunpack.c.h.b16 %v280
    %v1048 = vunpack.c.l.b16 %v281
    %v1049 = vunpack.c.h.b16 %v281
    %v1050 = vunpack.c.l.b16 %v282
    %v1051 = vunpack.c.h.b16 %v282
    %v1052 = vunpack.c.l.b16 %v283
    %v1053 = vunpack.c.h.b16 %v283
    %v1054 = vunpack.c.l.b16 %v284
    %v1055 = vunpack.c.h.b16 %v284
    %v1056 = vunpack.c.l.b16 %v285
    %v1057 = vunpack.c.h.b16 %v285
    %v1058 = vunpack.c.l.b16 %v286
    %v1059 = vunpack.c.h.b16 %v286
    %v1060 = vunpack.c.l.b16 %v287
    %v1061 = vunpack.c.h.b16 %v287
    %v1062 = vunpack.c.l.b16 %v288
    %v1063 = vunpack.c.h.b16 %v288
    %v1064 = vunpack.c.l.b16 %v289
    %v1065 = vunpack.c.h.b16 %v289
    %v1066 = vunpack.c.l.b16 %v290
    %v1067 = vunpack.c.h.b16 %v290
    %v1068 = vunpack.c.l.b16 %v291
    %v1069 = vunpack.c.h.b16 %v291
    %v1070 = vunpack.c.l.b16 %v292
    %v1071 = vunpack.c.h.b16 %v292
    %v1072 = vunpack.c.l.b16 %v293
    %v1073 = vunpack.c.h.b16 %v293
    %v1074 = vunpack.c.l.b16 %v294
    %v1075 = vunpack.c.h.b16 %v294
    %v1076 = vunpack.c.l.b16 %v295
    %v1077 = vunpack.c.h.b16 %v295
    %v1078 = vunpack.c.l.b16 %v296
    %v1079 = vunpack.c.h.b16 %v296
    %v1080 = vunpack.c.l.b16 %v297
    %v1081 = vunpack.c.h.b16 %v297
    %v1082 = vunpack.c.l.b16 %v298
    %v1083 = vunpack.c.h.b16 %v298
    %v1084 = vunpack.c.l.b16 %v299
    %v1085 = vunpack.c.h.b16 %v299
    %v1086 = vunpack.c.l.b16 %v300
    %v1087 = vunpack.c.h.b16 %v300
    %v1088 = vunpack.c.l.b16 %v301
    %v1089 = vunpack.c.h.b16 %v301
    %v1090 = vunpack.c.l.b16 %v302
    %v1091 = vunpack.c.h.b16 %v302
    %v1092 = vunpack.c.l.b16 %v303
    %v1093 = vunpack.c.h.b16 %v303
    %v1094 = vunpack.c.l.b16 %v304
    %v1095 = vunpack.c.h.b16 %v304
    %v1096 = vunpack.c.l.b16 %v305
    %v1097 = vunpack.c.h.b16 %v305
    %v1098 = vunpack.c.l.b16 %v306
    %v1099 = vunpack.c.h.b16 %v306
    %v1100 = vunpack.c.l.b16 %v307
    %v1101 = vunpack.c.h.b16 %v307
    %v1102 = vunpack.c.l.b16 %v308
    %v1103 = vunpack.c.h.b16 %v308
    %v1104 = vunpack.c.l.b16 %v309
    %v1105 = vunpack.c.h.b16 %v309
    %v1106 = vunpack.c.l.b16 %v310
    %v1107 = vunpack.c.h.b16 %v310
    %v1108 = vunpack.c.l.b16 %v311
    %v1109 = vunpack.c.h.b16 %v311
    %v1110 = vunpack.c.l.b16 %v312
    %v1111 = vunpack.c.h.b16 %v312
    %v1112 = vunpack.c.l.b16 %v313
    %v1113 = vunpack.c.h.b16 %v313
    %v1114 = vunpack.c.l.b16 %v314
    %v1115 = vunpack.c.h.b16 %v314
    %v1116 = vunpack.c.l.b16 %v315
    %v1117 = vunpack.c.h.b16 %v315
    %v1118 = vunpack.c.l.b16 %v316
    %v1119 = vunpack.c.h.b16 %v316
    %v1120 = vunpack.c.l.b16 %v317
    %v1121 = vunpack.c.h.b16 %v317
    %v1122 = vunpack.c.l.b16 %v318
    %v1123 = vunpack.c.h.b16 %v318
    %v1124 = vunpack.c.l.b16 %v319
    %v1125 = vunpack.c.h.b16 %v319
    %v1126 = vunpack.c.l.b16 %v320
    %v1127 = vunpack.c.h.b16 %v320
    %v1128 = vunpack.c.l.b16 %v321
    %v1129 = vunpack.c.h.b16 %v321
    %v1130 = vunpack.c.l.b16 %v322
    %v1131 = vunpack.c.h.b16 %v322
    %v1132 = vunpack.c.l.b16 %v323
    %v1133 = vunpack.c.h.b16 %v323
    %v1134 = vunpack.c.l.b16 %v324
    %v1135 = vunpack.c.h.b16 %v324
    %v1136 = vunpack.c.l.b16 %v325
    %v1137 = vunpack.c.h.b16 %v325
    %v1138 = vunpack.c.l.b16 %v326
    %v1139 = vunpack.c.h.b16 %v326
    %v1140 = vunpack.c.l.b16 %v327
    %v1141 = vunpack.c.h.b16 %v327
    %v1142 = vunpack.c.l.b16 %v328
    %v1143 = vunpack.c.h.b16 %v328
    %v1144 = vunpack.c.l.b16 %v329
    %v1145 = vunpack.c.h.b16 %v329
    %v1146 = vunpack.c.l.b16 %v330
    %v1147 = vunpack.c.h.b16 %v330
    %v1148 = vunpack.c.l.b16 %v331
    %v1149 = vunpack.c.h.b16 %v331
    %v1150 = vpack.c.b16 %v642, %v638
    %v1151 = vpack.c.b16 %v643, %v639
    %v1152 = vpack.c.b16 %v644, %v640
    %v1153 = vpack.c.b16 %v645, %v641
    %v1154 = vpack.c.b16 %v650, %v646
    %v1155 = vpack.c.b16 %v651, %v647
    %v1156 = vpack.c.b16 %v652, %v648
    %v1157 = vpack.c.b16 %v653, %v649
    %v1158 = vpack.c.b16 %v658, %v654
    %v1159 = vpack.c.b16 %v659, %v655
    %v1160 = vpack.c.b16 %v660, %v656
    %v1161 = vpack.c.b16 %v661, %v657
    %v1162 = vpack.c.b16 %v666, %v662
    %v1163 = vpack.c.b16 %v667, %v663
    %v1164 = vpack.c.b16 %v668, %v664
    %v1165 = vpack.c.b16 %v669, %v665
    %v1166 = vpack.c.b16 %v674, %v670
    %v1167 = vpack.c.b16 %v675, %v671
    %v1168 = vpack.c.b16 %v676, %v672
    %v1169 = vpack.c.b16 %v677, %v673
    %v1170 = vpack.c.b16 %v682, %v678
    %v1171 = vpack.c.b16 %v683, %v679
    %v1172 = vpack.c.b16 %v684, %v680
    %v1173 = vpack.c.b16 %v685, %v681
    %v1174 = vpack.c.b16 %v690, %v686
    %v1175 = vpack.c.b16 %v691, %v687
    %v1176 = vpack.c.b16 %v692, %v688
    %v1177 = vpack.c.b16 %v693, %v689
    %v1178 = vpack.c.b16 %v698, %v694
    %v1179 = vpack.c.b16 %v699, %v695
    %v1180 = vpack.c.b16 %v700, %v696
    %v1181 = vpack.c.b16 %v701, %v697
    %v1182 = vpack.c.b16 %v706, %v702
    %v1183 = vpack.c.b16 %v707, %v703
    %v1184 = vpack.c.b16 %v708, %v704
    %v1185 = vpack.c.b16 %v709, %v705
    %v1186 = vpack.c.b16 %v714, %v710
    %v1187 = vpack.c.b16 %v715, %v711
    %v1188 = vpack.c.b16 %v716, %v712
    %v1189 = vpack.c.b16 %v717, %v713
    %v1190 = vpack.c.b16 %v722, %v718
    %v1191 = vpack.c.b16 %v723, %v719
    %v1192 = vpack.c.b16 %v724, %v720
    %v1193 = vpack.c.b16 %v725, %v721
    %v1194 = vpack.c.b16 %v730, %v726
    %v1195 = vpack.c.b16 %v731, %v727
    %v1196 = vpack.c.b16 %v732, %v728
    %v1197 = vpack.c.b16 %v733, %v729
    %v1198 = vpack.c.b16 %v738, %v734
    %v1199 = vpack.c.b16 %v739, %v735
    %v1200 = vpack.c.b16 %v740, %v736
    %v1201 = vpack.c.b16 %v741, %v737
    %v1202 = vpack.c.b16 %v746, %v742
    %v1203 = vpack.c.b16 %v747, %v743
    %v1204 = vpack.c.b16 %v748, %v744
    %v1205 = vpack.c.b16 %v749, %v745
    %v1206 = vpack.c.b16 %v754, %v750
    %v1207 = vpack.c.b16 %v755, %v751
    %v1208 = vpack.c.b16 %v756, %v752
    %v1209 = vpack.c.b16 %v757, %v753
    %v1210 = vpack.c.b16 %v762, %v758
    %v1211 = vpack.c.b16 %v763, %v759
    %v1212 = vpack.c.b16 %v764, %v760
    %v1213 = vpack.c.b16 %v765, %v761
    %v1214 = vpack.c.b16 %v770, %v766
    %v1215 = vpack.c.b16 %v771, %v767
    %v1216 = vpack.c.b16 %v772, %v768
    %v1217 = vpack.c.b16 %v773, %v769
    %v1218 = vpack.c.b16 %v778, %v774
    %v1219 = vpack.c.b16 %v779, %v775
    %v1220 = vpack.c.b16 %v780, %v776
    %v1221 = vpack.c.b16 %v781, %v777
    %v1222 = vpack.c.b16 %v786, %v782
    %v1223 = vpack.c.b16 %v787, %v783
    %v1224 = vpack.c.b16 %v788, %v784
    %v1225 = vpack.c.b16 %v789, %v785
    %v1226 = vpack.c.b16 %v794, %v790
    %v1227 = vpack.c.b16 %v795, %v791
    %v1228 = vpack.c.b16 %v796, %v792
    %v1229 = vpack.c.b16 %v797, %v793
    %v1230 = vpack.c.b16 %v802, %v798
    %v1231 = vpack.c.b16 %v803, %v799
    %v1232 = vpack.c.b16 %v804, %v800
    %v1233 = vpack.c.b16 %v805, %v801
    %v1234 = vpack.c.b16 %v810, %v806
    %v1235 = vpack.c.b16 %v811, %v807
    %v1236 = vpack.c.b16 %v812, %v808
    %v1237 = vpack.c.b16 %v813, %v809
    %v1238 = vpack.c.b16 %v818, %v814
    %v1239 = vpack.c.b16 %v819, %v815
    %v1240 = vpack.c.b16 %v820, %v816
    %v1241 = vpack.c.b16 %v821, %v817
    %v1242 = vpack.c.b16 %v826, %v822
    %v1243 = vpack.c.b16 %v827, %v823
    %v1244 = vpack.c.b16 %v828, %v824
    %v1245 = vpack.c.b16 %v829, %v825
    %v1246 = vpack.c.b16 %v834, %v830
    %v1247 = vpack.c.b16 %v835, %v831
    %v1248 = vpack.c.b16 %v836, %v832
    %v1249 = vpack.c.b16 %v837, %v833
    %v1250 = vpack.c.b16 %v842, %v838
    %v1251 = vpack.c.b16 %v843, %v839
    %v1252 = vpack.c.b16 %v844, %v840
    %v1253 = vpack.c.b16 %v845, %v841
    %v1254 = vpack.c.b16 %v850, %v846
    %v1255 = vpack.c.b16 %v851, %v847
    %v1256 = vpack.c.b16 %v852, %v848
    %v1257 = vpack.c.b16 %v853, %v849
    %v1258 = vpack.c.b16 %v858, %v854
    %v1259 = vpack.c.b16 %v859, %v855
    %v1260 = vpack.c.b16 %v860, %v856
    %v1261 = vpack.c.b16 %v861, %v857
    %v1262 = vpack.c.b16 %v866, %v862
    %v1263 = vpack.c.b16 %v867, %v863
    %v1264 = vpack.c.b16 %v868, %v864
    %v1265 = vpack.c.b16 %v869, %v865
    %v1266 = vpack.c.b16 %v874, %v870
    %v1267 = vpack.c.b16 %v875, %v871
    %v1268 = vpack.c.b16 %v876, %v872
    %v1269 = vpack.c.b16 %v877, %v873
    %v1270 = vpack.c.b16 %v882, %v878
    %v1271 = vpack.c.b16 %v883, %v879
    %v1272 = vpack.c.b16 %v884, %v880
    %v1273 = vpack.c.b16 %v885, %v881
    %v1274 = vpack.c.b16 %v890, %v886
    %v1275 = vpack.c.b16 %v891, %v887
    %v1276 = vpack.c.b16 %v892, %v888
    %v1277 = vpack.c.b16 %v893, %v889
    %v1278 = vpack.c.b16 %v898, %v894
    %v1279 = vpack.c.b16 %v899, %v895
    %v1280 = vpack.c.b16 %v900, %v896
    %v1281 = vpack.c.b16 %v901, %v897
    %v1282 = vpack.c.b16 %v906, %v902
    %v1283 = vpack.c.b16 %v907, %v903
    %v1284 = vpack.c.b16 %v908, %v904
    %v1285 = vpack.c.b16 %v909, %v905
    %v1286 = vpack.c.b16 %v914, %v910
    %v1287 = vpack.c.b16 %v915, %v911
    %v1288 = vpack.c.b16 %v916, %v912
    %v1289 = vpack.c.b16 %v917, %v913
    %v1290 = vpack.c.b16 %v922, %v918
    %v1291 = vpack.c.b16 %v923, %v919
    %v1292 = vpack.c.b16 %v924, %v920
    %v1293 = vpack.c.b16 %v925, %v921
    %v1294 = vpack.c.b16 %v930, %v926
    %v1295 = vpack.c.b16 %v931, %v927
    %v1296 = vpack.c.b16 %v932, %v928
    %v1297 = vpack.c.b16 %v933, %v929
    %v1298 = vpack.c.b16 %v938, %v934
    %v1299 = vpack.c.b16 %v939, %v935
    %v1300 = vpack.c.b16 %v940, %v936
    %v1301 = vpack.c.b16 %v941, %v937
    %v1302 = vpack.c.b16 %v946, %v942
    %v1303 = vpack.c.b16 %v947, %v943
    %v1304 = vpack.c.b16 %v948, %v944
    %v1305 = vpack.c.b16 %v949, %v945
    %v1306 = vpack.c.b16 %v954, %v950
    %v1307 = vpack.c.b16 %v955, %v951
    %v1308 = vpack.c.b16 %v956, %v952
    %v1309 = vpack.c.b16 %v957, %v953
    %v1310 = vpack.c.b16 %v962, %v958
    %v1311 = vpack.c.b16 %v963, %v959
    %v1312 = vpack.c.b16 %v964, %v960
    %v1313 = vpack.c.b16 %v965, %v961
    %v1314 = vpack.c.b16 %v970, %v966
    %v1315 = vpack.c.b16 %v971, %v967
    %v1316 = vpack.c.b16 %v972, %v968
    %v1317 = vpack.c.b16 %v973, %v969
    %v1318 = vpack.c.b16 %v978, %v974
    %v1319 = vpack.c.b16 %v979, %v975
    %v1320 = vpack.c.b16 %v980, %v976
    %v1321 = vpack.c.b16 %v981, %v977
    %v1322 = vpack.c.b16 %v986, %v982
    %v1323 = vpack.c.b16 %v987, %v983
    %v1324 = vpack.c.b16 %v988, %v984
    %v1325 = vpack.c.b16 %v989, %v985
    %v1326 = vpack.c.b16 %v994, %v990
    %v1327 = vpack.c.b16 %v995, %v991
    %v1328 = vpack.c.b16 %v996, %v992
    %v1329 = vpack.c.b16 %v997, %v993
    %v1330 = vpack.c.b16 %v1002, %v998
    %v1331 = vpack.c.b16 %v1003, %v999
    %v1332 = vpack.c.b16 %v1004, %v1000
    %v1333 = vpack.c.b16 %v1005, %v1001
    %v1334 = vpack.c.b16 %v1010, %v1006
    %v1335 = vpack.c.b16 %v1011, %v1007
    %v1336 = vpack.c.b16 %v1012, %v1008
    %v1337 = vpack.c.b16 %v1013, %v1009
    %v1338 = vpack.c.b16 %v1018, %v1014
    %v1339 = vpack.c.b16 %v1019, %v1015
    %v1340 = vpack.c.b16 %v1020, %v1016
    %v1341 = vpack.c.b16 %v1021, %v1017
    %v1342 = vpack.c.b16 %v1026, %v1022
    %v1343 = vpack.c.b16 %v1027, %v1023
    %v1344 = vpack.c.b16 %v1028, %v1024
    %v1345 = vpack.c.b16 %v1029, %v1025
    %v1346 = vpack.c.b16 %v1034, %v1030
    %v1347 = vpack.c.b16 %v1035, %v1031
    %v1348 = vpack.c.b16 %v1036, %v1032
    %v1349 = vpack.c.b16 %v1037, %v1033
    %v1350 = vpack.c.b16 %v1042, %v1038
    %v1351 = vpack.c.b16 %v1043, %v1039
    %v1352 = vpack.c.b16 %v1044, %v1040
    %v1353 = vpack.c.b16 %v1045, %v1041
    %v1354 = vpack.c.b16 %v1050, %v1046
    %v1355 = vpack.c.b16 %v1051, %v1047
    %v1356 = vpack.c.b16 %v1052, %v1048
    %v1357 = vpack.c.b16 %v1053, %v1049
    %v1358 = vpack.c.b16 %v1058, %v1054
    %v1359 = vpack.c.b16 %v1059, %v1055
    %v1360 = vpack.c.b16 %v1060, %v1056
    %v1361 = vpack.c.b16 %v1061, %v1057
    %v1362 = vpack.c.b16 %v1066, %v1062
    %v1363 = vpack.c.b16 %v1067, %v1063
    %v1364 = vpack.c.b16 %v1068, %v1064
    %v1365 = vpack.c.b16 %v1069, %v1065
    %v1366 = vpack.c.b16 %v1074, %v1070
    %v1367 = vpack.c.b16 %v1075, %v1071
    %v1368 = vpack.c.b16 %v1076, %v1072
    %v1369 = vpack.c.b16 %v1077, %v1073
    %v1370 = vpack.c.b16 %v1082, %v1078
    %v1371 = vpack.c.b16 %v1083, %v1079
    %v1372 = vpack.c.b16 %v1084, %v1080
    %v1373 = vpack.c.b16 %v1085, %v1081
    %v1374 = vpack.c.b16 %v1090, %v1086
    %v1375 = vpack.c.b16 %v1091, %v1087
    %v1376 = vpack.c.b16 %v1092, %v1088
    %v1377 = vpack.c.b16 %v1093, %v1089
    %v1378 = vpack.c.b16 %v1098, %v1094
    %v1379 = vpack.c.b16 %v1099, %v1095
    %v1380 = vpack.c.b16 %v1100, %v1096
    %v1381 = vpack.c.b16 %v1101, %v1097
    %v1382 = vpack.c.b16 %v1106, %v1102
    %v1383 = vpack.c.b16 %v1107, %v1103
    %v1384 = vpack.c.b16 %v1108, %v1104
    %v1385 = vpack.c.b16 %v1109, %v1105
    %v1386 = vpack.c.b16 %v1114, %v1110
    %v1387 = vpack.c.b16 %v1115, %v1111
    %v1388 = vpack.c.b16 %v1116, %v1112
    %v1389 = vpack.c.b16 %v1117, %v1113
    %v1390 = vpack.c.b16 %v1122, %v1118
    %v1391 = vpack.c.b16 %v1123, %v1119
    %v1392 = vpack.c.b16 %v1124, %v1120
    %v1393 = vpack.c.b16 %v1125, %v1121
    %v1394 = vpack.c.b16 %v1130, %v1126
    %v1395 = vpack.c.b16 %v1131, %v1127
    %v1396 = vpack.c.b16 %v1132, %v1128
    %v1397 = vpack.c.b16 %v1133, %v1129
    %v1398 = vpack.c.b16 %v1138, %v1134
    %v1399 = vpack.c.b16 %v1139, %v1135
    %v1400 = vpack.c.b16 %v1140, %v1136
    %v1401 = vpack.c.b16 %v1141, %v1137
    %v1402 = vpack.c.b16 %v1146, %v1142
    %v1403 = vpack.c.b16 %v1147, %v1143
    %v1404 = vpack.c.b16 %v1148, %v1144
    %v1405 = vpack.c.b16 %v1149, %v1145
    %1662 = vmatprep.subr.bf16.mxu0 %v1179
    %1663 = vmatpush1.bf16.msra.mxu0 %v1178
    %1664 = vmatprep.subr.bf16.mxu0 %v1175
    %1665 = vmatpush1.bf16.msra.mxu0 %v1174
    %1666 = vmatprep.subr.bf16.mxu0 %v1171
    %1667 = vmatpush1.bf16.msra.mxu0 %v1170
    %1668 = vmatprep.subr.bf16.mxu0 %v1167
    %1669 = vmatpush1.bf16.msra.mxu0 %v1166
    %1670 = vmatprep.subr.bf16.mxu0 %v1163
    %1671 = vmatpush1.bf16.msra.mxu0 %v1162
    %1672 = vmatprep.subr.bf16.mxu0 %v1159
    %1673 = vmatpush1.bf16.msra.mxu0 %v1158
    %1674 = vmatprep.subr.bf16.mxu0 %v1155
    %1675 = vmatpush1.bf16.msra.mxu0 %v1154
    %1676 = vmatprep.subr.bf16.mxu0 %v1151
    %1677 = vmatpush1.bf16.msra.mxu0 %v1150
    %1678 = vmatprep.subr.bf16.mxu0 %v1211
    %1679 = vmatpush2.bf16.msra.mxu0 %v1210
    %1680 = vmatprep.subr.bf16.mxu0 %v1207
    %1681 = vmatpush2.bf16.msra.mxu0 %v1206
    %1682 = vmatprep.subr.bf16.mxu0 %v1203
    %1683 = vmatpush2.bf16.msra.mxu0 %v1202
    %1684 = vmatprep.subr.bf16.mxu0 %v1199
    %1685 = vmatpush2.bf16.msra.mxu0 %v1198
    %1686 = vmatprep.subr.bf16.mxu0 %v1195
    %1687 = vmatpush2.bf16.msra.mxu0 %v1194
    %1688 = vmatprep.subr.bf16.mxu0 %v1191
    %1689 = vmatpush2.bf16.msra.mxu0 %v1190
    %1690 = vmatprep.subr.bf16.mxu0 %v1187
    %1691 = vmatpush2.bf16.msra.mxu0 %v1186
    %1692 = vmatprep.subr.bf16.mxu0 %v1183
    %1693 = vmatpush2.bf16.msra.mxu0 %v1182
    %1694 = vmatprep.mubr.bf16.mxu0 %v367
    %1695 = vmatmul.mubr.bf16.gmra.mxu0 %v366
    %v1696 = vpop.f32.mrf.mxu0
    %v1697 = vadd.f32 %v337, %v1696
    %v1698 = vpop.f32.mrf.mxu0
    %v1699 = vadd.f32 %v341, %v1698
    %v1700 = vpop.f32.mrf.mxu0
    %v1701 = vpop.f32.mrf.mxu0
    %1702 = vdwg.mxu0
    %1703 = vmatprep.subr.bf16.mxu0 %v1243
    %1704 = vmatpush1.bf16.msra.mxu0 %v1242
    %1705 = vmatprep.subr.bf16.mxu0 %v1239
    %1706 = vmatpush1.bf16.msra.mxu0 %v1238
    %1707 = vmatprep.subr.bf16.mxu0 %v1235
    %1708 = vmatpush1.bf16.msra.mxu0 %v1234
    %1709 = vmatprep.subr.bf16.mxu0 %v1231
    %1710 = vmatpush1.bf16.msra.mxu0 %v1230
    %1711 = vmatprep.subr.bf16.mxu0 %v1227
    %1712 = vmatpush1.bf16.msra.mxu0 %v1226
    %1713 = vmatprep.subr.bf16.mxu0 %v1223
    %1714 = vmatpush1.bf16.msra.mxu0 %v1222
    %1715 = vmatprep.subr.bf16.mxu0 %v1219
    %1716 = vmatpush1.bf16.msra.mxu0 %v1218
    %1717 = vmatprep.subr.bf16.mxu0 %v1215
    %1718 = vmatpush1.bf16.msra.mxu0 %v1214
    %1719 = vmatprep.subr.bf16.mxu0 %v1275
    %1720 = vmatpush2.bf16.msra.mxu0 %v1274
    %1721 = vmatprep.subr.bf16.mxu0 %v1271
    %1722 = vmatpush2.bf16.msra.mxu0 %v1270
    %1723 = vmatprep.subr.bf16.mxu0 %v1267
    %1724 = vmatpush2.bf16.msra.mxu0 %v1266
    %1725 = vmatprep.subr.bf16.mxu0 %v1263
    %1726 = vmatpush2.bf16.msra.mxu0 %v1262
    %1727 = vmatprep.subr.bf16.mxu0 %v1259
    %1728 = vmatpush2.bf16.msra.mxu0 %v1258
    %1729 = vmatprep.subr.bf16.mxu0 %v1255
    %1730 = vmatpush2.bf16.msra.mxu0 %v1254
    %1731 = vmatprep.subr.bf16.mxu0 %v1251
    %1732 = vmatpush2.bf16.msra.mxu0 %v1250
    %1733 = vmatprep.subr.bf16.mxu0 %v1247
    %1734 = vmatpush2.bf16.msra.mxu0 %v1246
    %1735 = vmatprep.mubr.bf16.mxu0 %v369
    %1736 = vmatmul.mubr.bf16.gmra.mxu0 %v368
    %v1737 = vpop.f32.mrf.mxu0
    %v1738 = vadd.f32 %v1697, %v1737
    %v1739 = vpop.f32.mrf.mxu0
    %v1740 = vadd.f32 %v1699, %v1739
    %v1741 = vpop.f32.mrf.mxu0
    %v1742 = vpop.f32.mrf.mxu0
    %1743 = vdwg.mxu0
    %1744 = vmatprep.subr.bf16.mxu0 %v1307
    %1745 = vmatpush1.bf16.msra.mxu0 %v1306
    %1746 = vmatprep.subr.bf16.mxu0 %v1303
    %1747 = vmatpush1.bf16.msra.mxu0 %v1302
    %1748 = vmatprep.subr.bf16.mxu0 %v1299
    %1749 = vmatpush1.bf16.msra.mxu0 %v1298
    %1750 = vmatprep.subr.bf16.mxu0 %v1295
    %1751 = vmatpush1.bf16.msra.mxu0 %v1294
    %1752 = vmatprep.subr.bf16.mxu0 %v1291
    %1753 = vmatpush1.bf16.msra.mxu0 %v1290
    %1754 = vmatprep.subr.bf16.mxu0 %v1287
    %1755 = vmatpush1.bf16.msra.mxu0 %v1286
    %1756 = vmatprep.subr.bf16.mxu0 %v1283
    %1757 = vmatpush1.bf16.msra.mxu0 %v1282
    %1758 = vmatprep.subr.bf16.mxu0 %v1279
    %1759 = vmatpush1.bf16.msra.mxu0 %v1278
    %1760 = vmatprep.subr.bf16.mxu0 %v1339
    %1761 = vmatpush2.bf16.msra.mxu0 %v1338
    %1762 = vmatprep.subr.bf16.mxu0 %v1335
    %1763 = vmatpush2.bf16.msra.mxu0 %v1334
    %1764 = vmatprep.subr.bf16.mxu0 %v1331
    %1765 = vmatpush2.bf16.msra.mxu0 %v1330
    %1766 = vmatprep.subr.bf16.mxu0 %v1327
    %1767 = vmatpush2.bf16.msra.mxu0 %v1326
    %1768 = vmatprep.subr.bf16.mxu0 %v1323
    %1769 = vmatpush2.bf16.msra.mxu0 %v1322
    %1770 = vmatprep.subr.bf16.mxu0 %v1319
    %1771 = vmatpush2.bf16.msra.mxu0 %v1318
    %1772 = vmatprep.subr.bf16.mxu0 %v1315
    %1773 = vmatpush2.bf16.msra.mxu0 %v1314
    %1774 = vmatprep.subr.bf16.mxu0 %v1311
    %1775 = vmatpush2.bf16.msra.mxu0 %v1310
    %1776 = vmatprep.mubr.bf16.mxu0 %v371
    %1777 = vmatmul.mubr.bf16.gmra.mxu0 %v370
    %v1778 = vpop.f32.mrf.mxu0
    %v1779 = vadd.f32 %v1738, %v1778
    %v1780 = vpop.f32.mrf.mxu0
    %v1781 = vadd.f32 %v1740, %v1780
    %v1782 = vpop.f32.mrf.mxu0
    %v1783 = vpop.f32.mrf.mxu0
    %1784 = vdwg.mxu0
    %1785 = vmatprep.subr.bf16.mxu0 %v1371
    %1786 = vmatpush1.bf16.msra.mxu0 %v1370
    %1787 = vmatprep.subr.bf16.mxu0 %v1367
    %1788 = vmatpush1.bf16.msra.mxu0 %v1366
    %1789 = vmatprep.subr.bf16.mxu0 %v1363
    %1790 = vmatpush1.bf16.msra.mxu0 %v1362
    %1791 = vmatprep.subr.bf16.mxu0 %v1359
    %1792 = vmatpush1.bf16.msra.mxu0 %v1358
    %1793 = vmatprep.subr.bf16.mxu0 %v1355
    %1794 = vmatpush1.bf16.msra.mxu0 %v1354
    %1795 = vmatprep.subr.bf16.mxu0 %v1351
    %1796 = vmatpush1.bf16.msra.mxu0 %v1350
    %1797 = vmatprep.subr.bf16.mxu0 %v1347
    %1798 = vmatpush1.bf16.msra.mxu0 %v1346
    %1799 = vmatprep.subr.bf16.mxu0 %v1343
    %1800 = vmatpush1.bf16.msra.mxu0 %v1342
    %1801 = vmatprep.subr.bf16.mxu0 %v1403
    %1802 = vmatpush2.bf16.msra.mxu0 %v1402
    %1803 = vmatprep.subr.bf16.mxu0 %v1399
    %1804 = vmatpush2.bf16.msra.mxu0 %v1398
    %1805 = vmatprep.subr.bf16.mxu0 %v1395
    %1806 = vmatpush2.bf16.msra.mxu0 %v1394
    %1807 = vmatprep.subr.bf16.mxu0 %v1391
    %1808 = vmatpush2.bf16.msra.mxu0 %v1390
    %1809 = vmatprep.subr.bf16.mxu0 %v1387
    %1810 = vmatpush2.bf16.msra.mxu0 %v1386
    %1811 = vmatprep.subr.bf16.mxu0 %v1383
    %1812 = vmatpush2.bf16.msra.mxu0 %v1382
    %1813 = vmatprep.subr.bf16.mxu0 %v1379
    %1814 = vmatpush2.bf16.msra.mxu0 %v1378
    %1815 = vmatprep.subr.bf16.mxu0 %v1375
    %1816 = vmatpush2.bf16.msra.mxu0 %v1374
    %1817 = vmatprep.mubr.bf16.mxu0 %v373
    %1818 = vmatmul.mubr.bf16.gmra.mxu0 %v372
    %v1819 = vpop.f32.mrf.mxu0
    %v1820 = vadd.f32 %v1779, %v1819
    %v1821 = vpop.f32.mrf.mxu0
    %v1822 = vadd.f32 %v1781, %v1821
    %v1823 = vpop.f32.mrf.mxu0
    %v1824 = vpop.f32.mrf.mxu0
    %1825 = vdwg.mxu0
    %1826 = vmatprep.subr.bf16.mxu0 %v1181
    %1827 = vmatpush1.bf16.msra.mxu0 %v1180
    %1828 = vmatprep.subr.bf16.mxu0 %v1177
    %1829 = vmatpush1.bf16.msra.mxu0 %v1176
    %1830 = vmatprep.subr.bf16.mxu0 %v1173
    %1831 = vmatpush1.bf16.msra.mxu0 %v1172
    %1832 = vmatprep.subr.bf16.mxu0 %v1169
    %1833 = vmatpush1.bf16.msra.mxu0 %v1168
    %1834 = vmatprep.subr.bf16.mxu0 %v1165
    %1835 = vmatpush1.bf16.msra.mxu0 %v1164
    %1836 = vmatprep.subr.bf16.mxu0 %v1161
    %1837 = vmatpush1.bf16.msra.mxu0 %v1160
    %1838 = vmatprep.subr.bf16.mxu0 %v1157
    %1839 = vmatpush1.bf16.msra.mxu0 %v1156
    %1840 = vmatprep.subr.bf16.mxu0 %v1153
    %1841 = vmatpush1.bf16.msra.mxu0 %v1152
    %1842 = vmatprep.subr.bf16.mxu0 %v1213
    %1843 = vmatpush2.bf16.msra.mxu0 %v1212
    %1844 = vmatprep.subr.bf16.mxu0 %v1209
    %1845 = vmatpush2.bf16.msra.mxu0 %v1208
    %1846 = vmatprep.subr.bf16.mxu0 %v1205
    %1847 = vmatpush2.bf16.msra.mxu0 %v1204
    %1848 = vmatprep.subr.bf16.mxu0 %v1201
    %1849 = vmatpush2.bf16.msra.mxu0 %v1200
    %1850 = vmatprep.subr.bf16.mxu0 %v1197
    %1851 = vmatpush2.bf16.msra.mxu0 %v1196
    %1852 = vmatprep.subr.bf16.mxu0 %v1193
    %1853 = vmatpush2.bf16.msra.mxu0 %v1192
    %1854 = vmatprep.subr.bf16.mxu0 %v1189
    %1855 = vmatpush2.bf16.msra.mxu0 %v1188
    %1856 = vmatprep.subr.bf16.mxu0 %v1185
    %1857 = vmatpush2.bf16.msra.mxu0 %v1184
    %1858 = vmatprep.mubr.bf16.mxu0 %v367
    %1859 = vmatmul.mubr.bf16.gmra.mxu0 %v366
    %v1860 = vpop.f32.mrf.mxu0
    %v1861 = vadd.f32 %v345, %v1860
    %v1862 = vpop.f32.mrf.mxu0
    %v1863 = vadd.f32 %v349, %v1862
    %v1864 = vpop.f32.mrf.mxu0
    %v1865 = vpop.f32.mrf.mxu0
    %1866 = vdwg.mxu0
    %1867 = vmatprep.subr.bf16.mxu0 %v1245
    %1868 = vmatpush1.bf16.msra.mxu0 %v1244
    %1869 = vmatprep.subr.bf16.mxu0 %v1241
    %1870 = vmatpush1.bf16.msra.mxu0 %v1240
    %1871 = vmatprep.subr.bf16.mxu0 %v1237
    %1872 = vmatpush1.bf16.msra.mxu0 %v1236
    %1873 = vmatprep.subr.bf16.mxu0 %v1233
    %1874 = vmatpush1.bf16.msra.mxu0 %v1232
    %1875 = vmatprep.subr.bf16.mxu0 %v1229
    %1876 = vmatpush1.bf16.msra.mxu0 %v1228
    %1877 = vmatprep.subr.bf16.mxu0 %v1225
    %1878 = vmatpush1.bf16.msra.mxu0 %v1224
    %1879 = vmatprep.subr.bf16.mxu0 %v1221
    %1880 = vmatpush1.bf16.msra.mxu0 %v1220
    %1881 = vmatprep.subr.bf16.mxu0 %v1217
    %1882 = vmatpush1.bf16.msra.mxu0 %v1216
    %1883 = vmatprep.subr.bf16.mxu0 %v1277
    %1884 = vmatpush2.bf16.msra.mxu0 %v1276
    %1885 = vmatprep.subr.bf16.mxu0 %v1273
    %1886 = vmatpush2.bf16.msra.mxu0 %v1272
    %1887 = vmatprep.subr.bf16.mxu0 %v1269
    %1888 = vmatpush2.bf16.msra.mxu0 %v1268
    %1889 = vmatprep.subr.bf16.mxu0 %v1265
    %1890 = vmatpush2.bf16.msra.mxu0 %v1264
    %1891 = vmatprep.subr.bf16.mxu0 %v1261
    %1892 = vmatpush2.bf16.msra.mxu0 %v1260
    %1893 = vmatprep.subr.bf16.mxu0 %v1257
    %1894 = vmatpush2.bf16.msra.mxu0 %v1256
    %1895 = vmatprep.subr.bf16.mxu0 %v1253
    %1896 = vmatpush2.bf16.msra.mxu0 %v1252
    %1897 = vmatprep.subr.bf16.mxu0 %v1249
    %1898 = vmatpush2.bf16.msra.mxu0 %v1248
    %1899 = vmatprep.mubr.bf16.mxu0 %v369
    %1900 = vmatmul.mubr.bf16.gmra.mxu0 %v368
    %v1901 = vpop.f32.mrf.mxu0
    %v1902 = vadd.f32 %v1861, %v1901
    %v1903 = vpop.f32.mrf.mxu0
    %v1904 = vadd.f32 %v1863, %v1903
    %v1905 = vpop.f32.mrf.mxu0
    %v1906 = vpop.f32.mrf.mxu0
    %1907 = vdwg.mxu0
    %1908 = vmatprep.subr.bf16.mxu0 %v1309
    %1909 = vmatpush1.bf16.msra.mxu0 %v1308
    %1910 = vmatprep.subr.bf16.mxu0 %v1305
    %1911 = vmatpush1.bf16.msra.mxu0 %v1304
    %1912 = vmatprep.subr.bf16.mxu0 %v1301
    %1913 = vmatpush1.bf16.msra.mxu0 %v1300
    %1914 = vmatprep.subr.bf16.mxu0 %v1297
    %1915 = vmatpush1.bf16.msra.mxu0 %v1296
    %1916 = vmatprep.subr.bf16.mxu0 %v1293
    %1917 = vmatpush1.bf16.msra.mxu0 %v1292
    %1918 = vmatprep.subr.bf16.mxu0 %v1289
    %1919 = vmatpush1.bf16.msra.mxu0 %v1288
    %1920 = vmatprep.subr.bf16.mxu0 %v1285
    %1921 = vmatpush1.bf16.msra.mxu0 %v1284
    %1922 = vmatprep.subr.bf16.mxu0 %v1281
    %1923 = vmatpush1.bf16.msra.mxu0 %v1280
    %1924 = vmatprep.subr.bf16.mxu0 %v1341
    %1925 = vmatpush2.bf16.msra.mxu0 %v1340
    %1926 = vmatprep.subr.bf16.mxu0 %v1337
    %1927 = vmatpush2.bf16.msra.mxu0 %v1336
    %1928 = vmatprep.subr.bf16.mxu0 %v1333
    %1929 = vmatpush2.bf16.msra.mxu0 %v1332
    %1930 = vmatprep.subr.bf16.mxu0 %v1329
    %1931 = vmatpush2.bf16.msra.mxu0 %v1328
    %1932 = vmatprep.subr.bf16.mxu0 %v1325
    %1933 = vmatpush2.bf16.msra.mxu0 %v1324
    %1934 = vmatprep.subr.bf16.mxu0 %v1321
    %1935 = vmatpush2.bf16.msra.mxu0 %v1320
    %1936 = vmatprep.subr.bf16.mxu0 %v1317
    %1937 = vmatpush2.bf16.msra.mxu0 %v1316
    %1938 = vmatprep.subr.bf16.mxu0 %v1313
    %1939 = vmatpush2.bf16.msra.mxu0 %v1312
    %1940 = vmatprep.mubr.bf16.mxu0 %v371
    %1941 = vmatmul.mubr.bf16.gmra.mxu0 %v370
    %v1942 = vpop.f32.mrf.mxu0
    %v1943 = vadd.f32 %v1902, %v1942
    %v1944 = vpop.f32.mrf.mxu0
    %v1945 = vadd.f32 %v1904, %v1944
    %v1946 = vpop.f32.mrf.mxu0
    %v1947 = vpop.f32.mrf.mxu0
    %1948 = vdwg.mxu0
    %1949 = vmatprep.subr.bf16.mxu0 %v1373
    %1950 = vmatpush1.bf16.msra.mxu0 %v1372
    %1951 = vmatprep.subr.bf16.mxu0 %v1369
    %1952 = vmatpush1.bf16.msra.mxu0 %v1368
    %1953 = vmatprep.subr.bf16.mxu0 %v1365
    %1954 = vmatpush1.bf16.msra.mxu0 %v1364
    %1955 = vmatprep.subr.bf16.mxu0 %v1361
    %1956 = vmatpush1.bf16.msra.mxu0 %v1360
    %1957 = vmatprep.subr.bf16.mxu0 %v1357
    %1958 = vmatpush1.bf16.msra.mxu0 %v1356
    %1959 = vmatprep.subr.bf16.mxu0 %v1353
    %1960 = vmatpush1.bf16.msra.mxu0 %v1352
    %1961 = vmatprep.subr.bf16.mxu0 %v1349
    %1962 = vmatpush1.bf16.msra.mxu0 %v1348
    %1963 = vmatprep.subr.bf16.mxu0 %v1345
    %1964 = vmatpush1.bf16.msra.mxu0 %v1344
    %1965 = vmatprep.subr.bf16.mxu0 %v1405
    %1966 = vmatpush2.bf16.msra.mxu0 %v1404
    %1967 = vmatprep.subr.bf16.mxu0 %v1401
    %1968 = vmatpush2.bf16.msra.mxu0 %v1400
    %1969 = vmatprep.subr.bf16.mxu0 %v1397
    %1970 = vmatpush2.bf16.msra.mxu0 %v1396
    %1971 = vmatprep.subr.bf16.mxu0 %v1393
    %1972 = vmatpush2.bf16.msra.mxu0 %v1392
    %1973 = vmatprep.subr.bf16.mxu0 %v1389
    %1974 = vmatpush2.bf16.msra.mxu0 %v1388
    %1975 = vmatprep.subr.bf16.mxu0 %v1385
    %1976 = vmatpush2.bf16.msra.mxu0 %v1384
    %1977 = vmatprep.subr.bf16.mxu0 %v1381
    %1978 = vmatpush2.bf16.msra.mxu0 %v1380
    %1979 = vmatprep.subr.bf16.mxu0 %v1377
    %1980 = vmatpush2.bf16.msra.mxu0 %v1376
    %1981 = vmatprep.mubr.bf16.mxu0 %v373
    %1982 = vmatmul.mubr.bf16.gmra.mxu0 %v372
    %v1983 = vpop.f32.mrf.mxu0
    %v1984 = vadd.f32 %v1943, %v1983
    %v1985 = vpop.f32.mrf.mxu0
    %v1986 = vadd.f32 %v1945, %v1985
    %v1987 = vpop.f32.mrf.mxu0
    %v1988 = vpop.f32.mrf.mxu0
    %1989 = vdwg.mxu0
    %v1990 = vmax.f32 %v1820, 0.0
    %v1991 = vmax.f32 %v1822, 0.0
    %v1992 = vmax.f32 %v1984, 0.0
    %v1993 = vmax.f32 %v1986, 0.0
    %v1994 = vpack.c.bf16 %v1990, %v1990
    %v1995 = vpack.c.bf16 %v1991, %v1991
    %v1996 = vpack.c.bf16 %v1992, %v1992
    %v1997 = vpack.c.bf16 %v1993, %v1993
    %v1998 = vld [vmem:[#allocation8] sm:$0xff]
    %v1999 = vld [vmem:[#allocation8 + $0x8] sm:$0xff]
    %v2000 = vld [vmem:[#allocation8 + $0x10] sm:$0xff]
    %v2001 = vld [vmem:[#allocation8 + $0x18] sm:$0xff]
    %v2002 = vld [vmem:[#allocation8 + $0x20] sm:$0xff]
    %v2003 = vld [vmem:[#allocation8 + $0x28] sm:$0xff]
    %v2004 = vld [vmem:[#allocation8 + $0x30] sm:$0xff]
    %v2005 = vld [vmem:[#allocation8 + $0x38] sm:$0xff]
    %v2006 = vld [vmem:[#allocation8 + $0x40] sm:$0xff]
    %v2007 = vld [vmem:[#allocation8 + $0x48] sm:$0xff]
    %v2008 = vld [vmem:[#allocation8 + $0x50] sm:$0xff]
    %v2009 = vld [vmem:[#allocation8 + $0x58] sm:$0xff]
    %v2010 = vld [vmem:[#allocation8 + $0x60] sm:$0xff]
    %v2011 = vld [vmem:[#allocation8 + $0x68] sm:$0xff]
    %v2012 = vld [vmem:[#allocation8 + $0x70] sm:$0xff]
    %v2013 = vld [vmem:[#allocation8 + $0x78] sm:$0xff]
    %v2014 = vld [vmem:[#allocation8 + $0x80] sm:$0xff]
    %v2015 = vld [vmem:[#allocation8 + $0x88] sm:$0xff]
    %v2016 = vld [vmem:[#allocation8 + $0x90] sm:$0xff]
    %v2017 = vld [vmem:[#allocation8 + $0x98] sm:$0xff]
    %v2018 = vld [vmem:[#allocation8 + $0xa0] sm:$0xff]
    %v2019 = vld [vmem:[#allocation8 + $0xa8] sm:$0xff]
    %v2020 = vld [vmem:[#allocation8 + $0xb0] sm:$0xff]
    %v2021 = vld [vmem:[#allocation8 + $0xb8] sm:$0xff]
    %v2022 = vld [vmem:[#allocation8 + $0xc0] sm:$0xff]
    %v2023 = vld [vmem:[#allocation8 + $0xc8] sm:$0xff]
    %v2024 = vld [vmem:[#allocation8 + $0xd0] sm:$0xff]
    %v2025 = vld [vmem:[#allocation8 + $0xd8] sm:$0xff]
    %v2026 = vld [vmem:[#allocation8 + $0xe0] sm:$0xff]
    %v2027 = vld [vmem:[#allocation8 + $0xe8] sm:$0xff]
    %v2028 = vld [vmem:[#allocation8 + $0xf0] sm:$0xff]
    %v2029 = vld [vmem:[#allocation8 + $0xf8] sm:$0xff]
    %v2030 = vld [vmem:[#allocation8 + $0x100] sm:$0xff]
    %v2031 = vld [vmem:[#allocation8 + $0x108] sm:$0xff]
    %v2032 = vld [vmem:[#allocation8 + $0x110] sm:$0xff]
    %v2033 = vld [vmem:[#allocation8 + $0x118] sm:$0xff]
    %v2034 = vld [vmem:[#allocation8 + $0x120] sm:$0xff]
    %v2035 = vld [vmem:[#allocation8 + $0x128] sm:$0xff]
    %v2036 = vld [vmem:[#allocation8 + $0x130] sm:$0xff]
    %v2037 = vld [vmem:[#allocation8 + $0x138] sm:$0xff]
    %v2038 = vld [vmem:[#allocation8 + $0x140] sm:$0xff]
    %v2039 = vld [vmem:[#allocation8 + $0x148] sm:$0xff]
    %v2040 = vld [vmem:[#allocation8 + $0x150] sm:$0xff]
    %v2041 = vld [vmem:[#allocation8 + $0x158] sm:$0xff]
    %v2042 = vld [vmem:[#allocation8 + $0x160] sm:$0xff]
    %v2043 = vld [vmem:[#allocation8 + $0x168] sm:$0xff]
    %v2044 = vld [vmem:[#allocation8 + $0x170] sm:$0xff]
    %v2045 = vld [vmem:[#allocation8 + $0x178] sm:$0xff]
    %v2046 = vld [vmem:[#allocation8 + $0x180] sm:$0xff]
    %v2047 = vld [vmem:[#allocation8 + $0x188] sm:$0xff]
    %v2048 = vld [vmem:[#allocation8 + $0x190] sm:$0xff]
    %v2049 = vld [vmem:[#allocation8 + $0x198] sm:$0xff]
    %v2050 = vld [vmem:[#allocation8 + $0x1a0] sm:$0xff]
    %v2051 = vld [vmem:[#allocation8 + $0x1a8] sm:$0xff]
    %v2052 = vld [vmem:[#allocation8 + $0x1b0] sm:$0xff]
    %v2053 = vld [vmem:[#allocation8 + $0x1b8] sm:$0xff]
    %v2054 = vld [vmem:[#allocation8 + $0x1c0] sm:$0xff]
    %v2055 = vld [vmem:[#allocation8 + $0x1c8] sm:$0xff]
    %v2056 = vld [vmem:[#allocation8 + $0x1d0] sm:$0xff]
    %v2057 = vld [vmem:[#allocation8 + $0x1d8] sm:$0xff]
    %v2058 = vld [vmem:[#allocation8 + $0x1e0] sm:$0xff]
    %v2059 = vld [vmem:[#allocation8 + $0x1e8] sm:$0xff]
    %v2060 = vld [vmem:[#allocation8 + $0x1f0] sm:$0xff]
    %v2061 = vld [vmem:[#allocation8 + $0x1f8] sm:$0xff]
    %v2062 = vld [vmem:[%s4] sm:$0x3]
    %v2064 = vlaneseq
    %v2065 = vshrl.u32 %v2064, 7
    %v2066 = vsub.s32 0, %v2065
    %v2067 = vrot.slane %v2062, %v2066
    %v2068 = vlaneseq
    %v2069 = vshrl.u32 %v2068, 7
    %v2070 = vsub.s32 1, %v2069
    %v2071 = vrot.slane %v2062, %v2070
    %v2138 = vunpack.c.l.b16 %v1998
    %v2139 = vunpack.c.h.b16 %v1998
    %v2140 = vunpack.c.l.b16 %v1999
    %v2141 = vunpack.c.h.b16 %v1999
    %v2142 = vunpack.c.l.b16 %v2000
    %v2143 = vunpack.c.h.b16 %v2000
    %v2144 = vunpack.c.l.b16 %v2001
    %v2145 = vunpack.c.h.b16 %v2001
    %v2146 = vunpack.c.l.b16 %v2002
    %v2147 = vunpack.c.h.b16 %v2002
    %v2148 = vunpack.c.l.b16 %v2003
    %v2149 = vunpack.c.h.b16 %v2003
    %v2150 = vunpack.c.l.b16 %v2004
    %v2151 = vunpack.c.h.b16 %v2004
    %v2152 = vunpack.c.l.b16 %v2005
    %v2153 = vunpack.c.h.b16 %v2005
    %v2154 = vunpack.c.l.b16 %v2006
    %v2155 = vunpack.c.h.b16 %v2006
    %v2156 = vunpack.c.l.b16 %v2007
    %v2157 = vunpack.c.h.b16 %v2007
    %v2158 = vunpack.c.l.b16 %v2008
    %v2159 = vunpack.c.h.b16 %v2008
    %v2160 = vunpack.c.l.b16 %v2009
    %v2161 = vunpack.c.h.b16 %v2009
    %v2162 = vunpack.c.l.b16 %v2010
    %v2163 = vunpack.c.h.b16 %v2010
    %v2164 = vunpack.c.l.b16 %v2011
    %v2165 = vunpack.c.h.b16 %v2011
    %v2166 = vunpack.c.l.b16 %v2012
    %v2167 = vunpack.c.h.b16 %v2012
    %v2168 = vunpack.c.l.b16 %v2013
    %v2169 = vunpack.c.h.b16 %v2013
    %v2170 = vunpack.c.l.b16 %v2014
    %v2171 = vunpack.c.h.b16 %v2014
    %v2172 = vunpack.c.l.b16 %v2015
    %v2173 = vunpack.c.h.b16 %v2015
    %v2174 = vunpack.c.l.b16 %v2016
    %v2175 = vunpack.c.h.b16 %v2016
    %v2176 = vunpack.c.l.b16 %v2017
    %v2177 = vunpack.c.h.b16 %v2017
    %v2178 = vunpack.c.l.b16 %v2018
    %v2179 = vunpack.c.h.b16 %v2018
    %v2180 = vunpack.c.l.b16 %v2019
    %v2181 = vunpack.c.h.b16 %v2019
    %v2182 = vunpack.c.l.b16 %v2020
    %v2183 = vunpack.c.h.b16 %v2020
    %v2184 = vunpack.c.l.b16 %v2021
    %v2185 = vunpack.c.h.b16 %v2021
    %v2186 = vunpack.c.l.b16 %v2022
    %v2187 = vunpack.c.h.b16 %v2022
    %v2188 = vunpack.c.l.b16 %v2023
    %v2189 = vunpack.c.h.b16 %v2023
    %v2190 = vunpack.c.l.b16 %v2024
    %v2191 = vunpack.c.h.b16 %v2024
    %v2192 = vunpack.c.l.b16 %v2025
    %v2193 = vunpack.c.h.b16 %v2025
    %v2194 = vunpack.c.l.b16 %v2026
    %v2195 = vunpack.c.h.b16 %v2026
    %v2196 = vunpack.c.l.b16 %v2027
    %v2197 = vunpack.c.h.b16 %v2027
    %v2198 = vunpack.c.l.b16 %v2028
    %v2199 = vunpack.c.h.b16 %v2028
    %v2200 = vunpack.c.l.b16 %v2029
    %v2201 = vunpack.c.h.b16 %v2029
    %v2202 = vunpack.c.l.b16 %v2030
    %v2203 = vunpack.c.h.b16 %v2030
    %v2204 = vunpack.c.l.b16 %v2031
    %v2205 = vunpack.c.h.b16 %v2031
    %v2206 = vunpack.c.l.b16 %v2032
    %v2207 = vunpack.c.h.b16 %v2032
    %v2208 = vunpack.c.l.b16 %v2033
    %v2209 = vunpack.c.h.b16 %v2033
    %v2210 = vunpack.c.l.b16 %v2034
    %v2211 = vunpack.c.h.b16 %v2034
    %v2212 = vunpack.c.l.b16 %v2035
    %v2213 = vunpack.c.h.b16 %v2035
    %v2214 = vunpack.c.l.b16 %v2036
    %v2215 = vunpack.c.h.b16 %v2036
    %v2216 = vunpack.c.l.b16 %v2037
    %v2217 = vunpack.c.h.b16 %v2037
    %v2218 = vunpack.c.l.b16 %v2038
    %v2219 = vunpack.c.h.b16 %v2038
    %v2220 = vunpack.c.l.b16 %v2039
    %v2221 = vunpack.c.h.b16 %v2039
    %v2222 = vunpack.c.l.b16 %v2040
    %v2223 = vunpack.c.h.b16 %v2040
    %v2224 = vunpack.c.l.b16 %v2041
    %v2225 = vunpack.c.h.b16 %v2041
    %v2226 = vunpack.c.l.b16 %v2042
    %v2227 = vunpack.c.h.b16 %v2042
    %v2228 = vunpack.c.l.b16 %v2043
    %v2229 = vunpack.c.h.b16 %v2043
    %v2230 = vunpack.c.l.b16 %v2044
    %v2231 = vunpack.c.h.b16 %v2044
    %v2232 = vunpack.c.l.b16 %v2045
    %v2233 = vunpack.c.h.b16 %v2045
    %v2234 = vunpack.c.l.b16 %v2046
    %v2235 = vunpack.c.h.b16 %v2046
    %v2236 = vunpack.c.l.b16 %v2047
    %v2237 = vunpack.c.h.b16 %v2047
    %v2238 = vunpack.c.l.b16 %v2048
    %v2239 = vunpack.c.h.b16 %v2048
    %v2240 = vunpack.c.l.b16 %v2049
    %v2241 = vunpack.c.h.b16 %v2049
    %v2242 = vunpack.c.l.b16 %v2050
    %v2243 = vunpack.c.h.b16 %v2050
    %v2244 = vunpack.c.l.b16 %v2051
    %v2245 = vunpack.c.h.b16 %v2051
    %v2246 = vunpack.c.l.b16 %v2052
    %v2247 = vunpack.c.h.b16 %v2052
    %v2248 = vunpack.c.l.b16 %v2053
    %v2249 = vunpack.c.h.b16 %v2053
    %v2250 = vunpack.c.l.b16 %v2054
    %v2251 = vunpack.c.h.b16 %v2054
    %v2252 = vunpack.c.l.b16 %v2055
    %v2253 = vunpack.c.h.b16 %v2055
    %v2254 = vunpack.c.l.b16 %v2056
    %v2255 = vunpack.c.h.b16 %v2056
    %v2256 = vunpack.c.l.b16 %v2057
    %v2257 = vunpack.c.h.b16 %v2057
    %v2258 = vunpack.c.l.b16 %v2058
    %v2259 = vunpack.c.h.b16 %v2058
    %v2260 = vunpack.c.l.b16 %v2059
    %v2261 = vunpack.c.h.b16 %v2059
    %v2262 = vunpack.c.l.b16 %v2060
    %v2263 = vunpack.c.h.b16 %v2060
    %v2264 = vunpack.c.l.b16 %v2061
    %v2265 = vunpack.c.h.b16 %v2061
    %v2266 = vpack.c.b16 %v2140, %v2138
    %v2267 = vpack.c.b16 %v2141, %v2139
    %v2268 = vpack.c.b16 %v2144, %v2142
    %v2269 = vpack.c.b16 %v2145, %v2143
    %v2270 = vpack.c.b16 %v2148, %v2146
    %v2271 = vpack.c.b16 %v2149, %v2147
    %v2272 = vpack.c.b16 %v2152, %v2150
    %v2273 = vpack.c.b16 %v2153, %v2151
    %v2274 = vpack.c.b16 %v2156, %v2154
    %v2275 = vpack.c.b16 %v2157, %v2155
    %v2276 = vpack.c.b16 %v2160, %v2158
    %v2277 = vpack.c.b16 %v2161, %v2159
    %v2278 = vpack.c.b16 %v2164, %v2162
    %v2279 = vpack.c.b16 %v2165, %v2163
    %v2280 = vpack.c.b16 %v2168, %v2166
    %v2281 = vpack.c.b16 %v2169, %v2167
    %v2282 = vpack.c.b16 %v2172, %v2170
    %v2283 = vpack.c.b16 %v2173, %v2171
    %v2284 = vpack.c.b16 %v2176, %v2174
    %v2285 = vpack.c.b16 %v2177, %v2175
    %v2286 = vpack.c.b16 %v2180, %v2178
    %v2287 = vpack.c.b16 %v2181, %v2179
    %v2288 = vpack.c.b16 %v2184, %v2182
    %v2289 = vpack.c.b16 %v2185, %v2183
    %v2290 = vpack.c.b16 %v2188, %v2186
    %v2291 = vpack.c.b16 %v2189, %v2187
    %v2292 = vpack.c.b16 %v2192, %v2190
    %v2293 = vpack.c.b16 %v2193, %v2191
    %v2294 = vpack.c.b16 %v2196, %v2194
    %v2295 = vpack.c.b16 %v2197, %v2195
    %v2296 = vpack.c.b16 %v2200, %v2198
    %v2297 = vpack.c.b16 %v2201, %v2199
    %v2298 = vpack.c.b16 %v2204, %v2202
    %v2299 = vpack.c.b16 %v2205, %v2203
    %v2300 = vpack.c.b16 %v2208, %v2206
    %v2301 = vpack.c.b16 %v2209, %v2207
    %v2302 = vpack.c.b16 %v2212, %v2210
    %v2303 = vpack.c.b16 %v2213, %v2211
    %v2304 = vpack.c.b16 %v2216, %v2214
    %v2305 = vpack.c.b16 %v2217, %v2215
    %v2306 = vpack.c.b16 %v2220, %v2218
    %v2307 = vpack.c.b16 %v2221, %v2219
    %v2308 = vpack.c.b16 %v2224, %v2222
    %v2309 = vpack.c.b16 %v2225, %v2223
    %v2310 = vpack.c.b16 %v2228, %v2226
    %v2311 = vpack.c.b16 %v2229, %v2227
    %v2312 = vpack.c.b16 %v2232, %v2230
    %v2313 = vpack.c.b16 %v2233, %v2231
    %v2314 = vpack.c.b16 %v2236, %v2234
    %v2315 = vpack.c.b16 %v2237, %v2235
    %v2316 = vpack.c.b16 %v2240, %v2238
    %v2317 = vpack.c.b16 %v2241, %v2239
    %v2318 = vpack.c.b16 %v2244, %v2242
    %v2319 = vpack.c.b16 %v2245, %v2243
    %v2320 = vpack.c.b16 %v2248, %v2246
    %v2321 = vpack.c.b16 %v2249, %v2247
    %v2322 = vpack.c.b16 %v2252, %v2250
    %v2323 = vpack.c.b16 %v2253, %v2251
    %v2324 = vpack.c.b16 %v2256, %v2254
    %v2325 = vpack.c.b16 %v2257, %v2255
    %v2326 = vpack.c.b16 %v2260, %v2258
    %v2327 = vpack.c.b16 %v2261, %v2259
    %v2328 = vpack.c.b16 %v2264, %v2262
    %v2329 = vpack.c.b16 %v2265, %v2263
    %2394 = vmatprep.subr.bf16.mxu0 %v2281
    %2395 = vmatpush1.bf16.msra.mxu0 %v2280
    %2396 = vmatprep.subr.bf16.mxu0 %v2279
    %2397 = vmatpush1.bf16.msra.mxu0 %v2278
    %2398 = vmatprep.subr.bf16.mxu0 %v2277
    %2399 = vmatpush1.bf16.msra.mxu0 %v2276
    %2400 = vmatprep.subr.bf16.mxu0 %v2275
    %2401 = vmatpush1.bf16.msra.mxu0 %v2274
    %2402 = vmatprep.subr.bf16.mxu0 %v2273
    %2403 = vmatpush1.bf16.msra.mxu0 %v2272
    %2404 = vmatprep.subr.bf16.mxu0 %v2271
    %2405 = vmatpush1.bf16.msra.mxu0 %v2270
    %2406 = vmatprep.subr.bf16.mxu0 %v2269
    %2407 = vmatpush1.bf16.msra.mxu0 %v2268
    %2408 = vmatprep.subr.bf16.mxu0 %v2267
    %2409 = vmatpush1.bf16.msra.mxu0 %v2266
    %2410 = vmatprep.subr.bf16.mxu0 %v2297
    %2411 = vmatpush2.bf16.msra.mxu0 %v2296
    %2412 = vmatprep.subr.bf16.mxu0 %v2295
    %2413 = vmatpush2.bf16.msra.mxu0 %v2294
    %2414 = vmatprep.subr.bf16.mxu0 %v2293
    %2415 = vmatpush2.bf16.msra.mxu0 %v2292
    %2416 = vmatprep.subr.bf16.mxu0 %v2291
    %2417 = vmatpush2.bf16.msra.mxu0 %v2290
    %2418 = vmatprep.subr.bf16.mxu0 %v2289
    %2419 = vmatpush2.bf16.msra.mxu0 %v2288
    %2420 = vmatprep.subr.bf16.mxu0 %v2287
    %2421 = vmatpush2.bf16.msra.mxu0 %v2286
    %2422 = vmatprep.subr.bf16.mxu0 %v2285
    %2423 = vmatpush2.bf16.msra.mxu0 %v2284
    %2424 = vmatprep.subr.bf16.mxu0 %v2283
    %2425 = vmatpush2.bf16.msra.mxu0 %v2282
    %2426 = vmatprep.mubr.bf16.mxu0 %v1995
    %2427 = vmatmul.mubr.bf16.gmra.mxu0 %v1994
    %v2428 = vpop.f32.mrf.mxu0
    %v2429 = vadd.f32 %v2067, %v2428
    %v2430 = vpop.f32.mrf.mxu0
    %v2431 = vadd.f32 %v2071, %v2430
    %v2432 = vpop.f32.mrf.mxu0
    %v2433 = vpop.f32.mrf.mxu0
    %2434 = vdwg.mxu0
    %2435 = vmatprep.subr.bf16.mxu0 %v2313
    %2436 = vmatpush1.bf16.msra.mxu0 %v2312
    %2437 = vmatprep.subr.bf16.mxu0 %v2311
    %2438 = vmatpush1.bf16.msra.mxu0 %v2310
    %2439 = vmatprep.subr.bf16.mxu0 %v2309
    %2440 = vmatpush1.bf16.msra.mxu0 %v2308
    %2441 = vmatprep.subr.bf16.mxu0 %v2307
    %2442 = vmatpush1.bf16.msra.mxu0 %v2306
    %2443 = vmatprep.subr.bf16.mxu0 %v2305
    %2444 = vmatpush1.bf16.msra.mxu0 %v2304
    %2445 = vmatprep.subr.bf16.mxu0 %v2303
    %2446 = vmatpush1.bf16.msra.mxu0 %v2302
    %2447 = vmatprep.subr.bf16.mxu0 %v2301
    %2448 = vmatpush1.bf16.msra.mxu0 %v2300
    %2449 = vmatprep.subr.bf16.mxu0 %v2299
    %2450 = vmatpush1.bf16.msra.mxu0 %v2298
    %2451 = vmatprep.subr.bf16.mxu0 %v2329
    %2452 = vmatpush2.bf16.msra.mxu0 %v2328
    %2453 = vmatprep.subr.bf16.mxu0 %v2327
    %2454 = vmatpush2.bf16.msra.mxu0 %v2326
    %2455 = vmatprep.subr.bf16.mxu0 %v2325
    %2456 = vmatpush2.bf16.msra.mxu0 %v2324
    %2457 = vmatprep.subr.bf16.mxu0 %v2323
    %2458 = vmatpush2.bf16.msra.mxu0 %v2322
    %2459 = vmatprep.subr.bf16.mxu0 %v2321
    %2460 = vmatpush2.bf16.msra.mxu0 %v2320
    %2461 = vmatprep.subr.bf16.mxu0 %v2319
    %2462 = vmatpush2.bf16.msra.mxu0 %v2318
    %2463 = vmatprep.subr.bf16.mxu0 %v2317
    %2464 = vmatpush2.bf16.msra.mxu0 %v2316
    %2465 = vmatprep.subr.bf16.mxu0 %v2315
    %2466 = vmatpush2.bf16.msra.mxu0 %v2314
    %2467 = vmatprep.mubr.bf16.mxu0 %v1997
    %2468 = vmatmul.mubr.bf16.gmra.mxu0 %v1996
    %v2469 = vpop.f32.mrf.mxu0
    %v2470 = vadd.f32 %v2429, %v2469
    %v2471 = vpop.f32.mrf.mxu0
    %v2472 = vadd.f32 %v2431, %v2471
    %v2473 = vpop.f32.mrf.mxu0
    %v2474 = vpop.f32.mrf.mxu0
    %2475 = vdwg.mxu0
    %v2476 = vmax.f32 %v2470, 0.0
    %v2477 = vmax.f32 %v2472, 0.0
    %2478 = vst [vmem:[#allocation10] sm:$0xff] %v2476
    %2479 = vst [vmem:[#allocation10 + $0x8] sm:$0xff] %v2477
    // Predicated region
    $region38: #{tpu_custom_call.1} parent=1 // pred_check
      _
    $region39: #{tpu_custom_call.1} parent=1 // pred_check_branch
      %2481 = sbr.rel (0) target = $region41
    $region40: #{tpu_custom_call.1} parent=1 // pred_region
      %s2483 = ssub.s32 256, 256
      %2484 = vsyncadd [#allocation4], %s2483
      %s2486 = sshll.u32 [#allocation10], 4
      %s2487 = int_to_ptr.vmem [resolvable:$true] %s2486
      %2489 = dma.vmem_to_hbm [thread:$0]  %s2487, 256, %s5, [#allocation4]
    $region41: #{tpu_custom_call.1} parent=1 // pred_fallthru
      _
    // Predicated region
    $region42: #{tpu_custom_call.1} parent=1 // pred_check
      _
    $region43: #{tpu_custom_call.1} parent=1 // pred_check_branch
      %2491 = sbr.rel (0) target = $region45
    $region44: #{tpu_custom_call.1} parent=1 // pred_region
      %2492 = dma.done [#allocation4], 256
    $region45: #{tpu_custom_call.1} parent=1 // pred_fallthru
      _
    %2493 = vsyncpa [#allocation3], 1
    %2494 = vsyncpa [#allocation6], 1
    %2495 = vsyncpa [#allocation9], 1
    %2496 = vsyncpa [#allocation4], 1

</llo_original>
